<compile_context>
chip_gen: v5e
topology: v5e:2x2
jax: 0.10.0
libtpu: 0.0.40
codegen_flags: <defaults>
</compile_context>

<pallas_src>
import functools

import jax
import jax.numpy as jnp
from jax.experimental import pallas as pl
from jax.experimental.pallas import tpu as pltpu

FEATURE_DIM = 32       # projector feature_dim (small demo stand-in for 512)
BACKBONE_DIM = 64      # backbone.output_dim
D_PAD = 128            # lane-dense padded feature width
B_PAD = 128            # lane-dense padded backbone width
NC_PAD = 128           # lane-dense padded class count (logits last dim)
MAX_ROW_TILE = 1024    # per review: big tiles amortize per-step overhead
IMG_VMEM_BUDGET = 24 << 20   # bytes of VMEM allowed for image double-buffers
GAP_FOLD_MAX_CHW = 4096      # fold GAP into the backbone matmul only below this


def _round_up(x, m):
    return (x + m - 1) // m * m


def _pick_row_tile(n_rows_needed, chw, n_image_inputs):
    # Cap the row tile so image double-buffers stay inside IMG_VMEM_BUDGET.
    cap = IMG_VMEM_BUDGET // (n_image_inputs * 2 * chw * 4)
    cap = max(8, cap // 8 * 8)
    return max(8, min(MAX_ROW_TILE, cap, _round_up(n_rows_needed, 8)))


def _vmem_limit(bytes_needed):
    # Explicit scoped-VMEM limit: computed usage + 25% + 2 MiB slack,
    # floored at the v7x scoped default.
    return int(min(max(bytes_needed * 5 // 4 + (2 << 20), 32 << 20), 128 << 20))


# ----------------------------------------------------------------------------
# In-kernel helpers (traced inline into both kernels)
# ----------------------------------------------------------------------------
def _encode_block(x, wb, bb, w1, b1, w2, b2, *, pool_hw):
    if pool_hw is None:
        # GAP folded into wb host-side (small images): one K = C*H*W MXU dot.
        f0 = jnp.dot(x, wb, preferred_element_type=jnp.float32)
    else:
        # Large images: pool in-kernel (VPU/XLU), matmul the small (C, B_PAD) wb.
        c = x.shape[-1] // pool_hw
        pooled = jnp.sum(x.reshape(x.shape[0], c, pool_hw), axis=-1) * (1.0 / pool_hw)
        f0 = jnp.dot(pooled, wb, preferred_element_type=jnp.float32)
    f0 = jnp.maximum(f0 + bb, 0.0)
    # Projector: Linear -> ReLU -> Dropout(eval: identity) -> Linear.
    # TODO(synk): nn.Dropout training-mode RNG drop not emitted (eval parity only).
    h = jnp.maximum(jnp.dot(f0, w1, preferred_element_type=jnp.float32) + b1, 0.0)
    z = jnp.dot(h, w2, preferred_element_type=jnp.float32) + b2
    # F.normalize(dim=-1, eps=1e-12): clamp ||z||^2 at eps^2, single EUP rsqrt.
    ssq = jnp.sum(z * z, axis=-1, keepdims=True)
    return z * jax.lax.rsqrt(jnp.maximum(ssq, 1e-24))


def _nt_dot(a, b):
    # a @ b.T contracting the last dims of both operands (MXU-native), f32 acc.
    return jax.lax.dot_general(a, b, (((1,), (1,)), ((), ())),
                               preferred_element_type=jnp.float32)


def _neg_dist_from_parts(qp, p_sq):
    # q is L2-normalized -> ||q||^2 == 1 exactly; clamp cancellation at 0.
    return -jnp.sqrt(jnp.maximum(1.0 + p_sq - 2.0 * qp, 0.0))


# ----------------------------------------------------------------------------
# Kernels
# ----------------------------------------------------------------------------
def _fused_kernel(sup_ref, qry_ref, wb_ref, bb_ref, w1_ref, b1_ref, w2_ref,
                  b2_ref, labels_ref, logits_ref, protos_ref, feats_ref,
                  *, row_tile, ns_tiles, ns_rows, nq_rows, pool_hw):
    i = pl.program_id(0)
    # Support tiles occupy grid steps [0, ns_tiles); query tiles follow.
    # feats layout: support rows first (ns_rows), then query rows (nq_rows),
    # so the write offset is simply i * row_tile for both phases.
    row0 = pl.multiple_of(i * row_tile, 8)

    def _encode_store(x_ref):
        feats_ref[pl.ds(row0, row_tile), :] = _encode_block(
            x_ref[...], wb_ref[...], bb_ref[...], w1_ref[...], b1_ref[...],
            w2_ref[...], b2_ref[...], pool_hw=pool_hw)

    @pl.when(i < ns_tiles)
    def _():
        _encode_store(sup_ref)

    @pl.when(i >= ns_tiles)
    def _():
        _encode_store(qry_ref)

    @pl.when(i == pl.num_programs(0) - 1)
    def _():
        sup = feats_ref[pl.ds(0, ns_rows), :]          # (ns_rows, D_PAD)
        qry = feats_ref[pl.ds(ns_rows, nq_rows), :]    # (nq_rows, D_PAD)
        # One-hot built in-kernel from labels (pad labels are -1 -> no match).
        labels = labels_ref[...]                                      # (1, ns_rows)
        cls = jax.lax.broadcasted_iota(jnp.int32, (NC_PAD, ns_rows), 0)
        onehot = (labels == cls).astype(jnp.float32)                  # (NC_PAD, ns_rows)
        sums = jnp.dot(onehot, sup, preferred_element_type=jnp.float32)
        counts = jnp.sum(onehot, axis=-1, keepdims=True)
        # Empty class -> zero prototype (matches the PyTorch `if mask.sum() > 0`
        # guard, which leaves the torch.zeros row untouched).
        protos = sums / jnp.maximum(counts, 1.0)
        protos_ref[...] = protos
        p_sq = _nt_dot(jnp.ones((1, D_PAD), jnp.float32), protos * protos)  # (1, NC_PAD)
        qp = _nt_dot(qry, protos)                                           # (nq_rows, NC_PAD)
        logits_ref[...] = _neg_dist_from_parts(qp, p_sq)


def _query_kernel(x_ref, wb_ref, bb_ref, w1_ref, b1_ref, w2_ref, b2_ref,
                  protos_ref, psq_ref, logits_ref, *, pool_hw):
    zn = _encode_block(x_ref[...], wb_ref[...], bb_ref[...], w1_ref[...],
                       b1_ref[...], w2_ref[...], b2_ref[...], pool_hw=pool_hw)
    qp = _nt_dot(zn, protos_ref[...])
    logits_ref[...] = _neg_dist_from_parts(qp, psq_ref[...])


# ----------------------------------------------------------------------------
# Host-side preparation
# ----------------------------------------------------------------------------
def _prepare_params(params, hw, fold_gap):
    wb = params["wb"].astype(jnp.float32)                 # (C, BACKBONE_DIM)
    bdim = wb.shape[1]
    fdim = params["w1"].shape[1]
    if fold_gap:
        # Fold global-average-pool into the backbone matmul (small images only).
        wb = jnp.repeat(wb, hw, axis=0) / float(hw)       # (C*H*W, bdim)
    wb = jnp.pad(wb, ((0, 0), (0, B_PAD - bdim)))
    bb = jnp.pad(params["bb"].reshape(1, -1).astype(jnp.float32),
                 ((0, 0), (0, B_PAD - bdim)))
    w1 = jnp.pad(params["w1"].astype(jnp.float32),
                 ((0, B_PAD - bdim), (0, D_PAD - fdim)))
    b1 = jnp.pad(params["b1"].reshape(1, -1).astype(jnp.float32),
                 ((0, 0), (0, D_PAD - fdim)))
    w2 = jnp.pad(params["w2"].astype(jnp.float32),
                 ((0, D_PAD - fdim), (0, D_PAD - fdim)))
    b2 = jnp.pad(params["b2"].reshape(1, -1).astype(jnp.float32),
                 ((0, 0), (0, D_PAD - fdim)))
    return wb, bb, w1, b1, w2, b2


def _flatten_pad_rows(images, n_rows):
    n = images.shape[0]
    x = images.reshape(n, -1).astype(jnp.float32)
    return jnp.pad(x, ((0, n_rows - n), (0, 0)))


# ----------------------------------------------------------------------------
# Forward wrappers
# ----------------------------------------------------------------------------
def _fused_forward(params, support_images, support_labels, query_images,
                   n_classes):
    ns, c, h, w = support_images.shape
    nq = query_images.shape[0]
    chw = c * h * w
    hw = h * w
    fold_gap = chw <= GAP_FOLD_MAX_CHW
    pool_hw = None if fold_gap else hw

    row_tile = _pick_row_tile(max(ns, nq), chw, n_image_inputs=2)
    ns_rows = _round_up(ns, row_tile)
    nq_rows = _round_up(nq, row_tile)
    ns_tiles = ns_rows // row_tile
    nq_tiles = nq_rows // row_tile
    grid = (ns_tiles + nq_tiles,)

    # Support and query stay separate (no concat copy): images are read from
    # HBM exactly once.  Clamped index maps skip DMA for the inactive input.
    xs = _flatten_pad_rows(support_images, ns_rows)
    xq = _flatten_pad_rows(query_images, nq_rows)

    labels = jnp.full((1, ns_rows), -1, jnp.int32)
    labels = labels.at[0, :ns].set(support_labels.astype(jnp.int32))

    wb, bb, w1, b1, w2, b2 = _prepare_params(params, hw, fold_gap)

    const = lambda i: (0, 0)
    once = pl.Buffered(1)   # constant blocks: single buffer, no wasted copy

    weight_bytes = (wb.size + bb.size + w1.size + b1.size + w2.size + b2.size) * 4
    vmem_bytes = (2 * 2 * row_tile * chw * 4          # sup + qry tiles, double buffered
                  + weight_bytes                      # single-buffered constants
                  + 8 * _round_up(ns_rows, 128) * 4   # labels (padded)
                  + (ns_rows + nq_rows) * D_PAD * 4   # feats scratch
                  + 2 * (nq_rows * NC_PAD + NC_PAD * D_PAD) * 4)  # outputs

    kernel = functools.partial(_fused_kernel, row_tile=row_tile,
                               ns_tiles=ns_tiles, ns_rows=ns_rows,
                               nq_rows=nq_rows, pool_hw=pool_hw)
    logits_pad, protos_pad = pl.pallas_call(
        kernel,
        out_shape=(jax.ShapeDtypeStruct((nq_rows, NC_PAD), jnp.float32),
                   jax.ShapeDtypeStruct((NC_PAD, D_PAD), jnp.float32)),
        grid_spec=pltpu.PrefetchScalarGridSpec(
            num_scalar_prefetch=0,
            grid=grid,
            in_specs=[
                pl.BlockSpec((row_tile, chw),
                             lambda i: (jnp.minimum(i, ns_tiles - 1), 0)),
                pl.BlockSpec((row_tile, chw),
                             lambda i: (jnp.maximum(i - ns_tiles, 0), 0)),
                pl.BlockSpec(wb.shape, const, pipeline_mode=once),
                pl.BlockSpec(bb.shape, const, pipeline_mode=once),
                pl.BlockSpec(w1.shape, const, pipeline_mode=once),
                pl.BlockSpec(b1.shape, const, pipeline_mode=once),
                pl.BlockSpec(w2.shape, const, pipeline_mode=once),
                pl.BlockSpec(b2.shape, const, pipeline_mode=once),
                pl.BlockSpec(labels.shape, const, pipeline_mode=once),
            ],
            out_specs=(pl.BlockSpec((nq_rows, NC_PAD), const),
                       pl.BlockSpec((NC_PAD, D_PAD), const)),
            scratch_shapes=[pltpu.VMEM((ns_rows + nq_rows, D_PAD), jnp.float32)]),
        compiler_params=pltpu.CompilerParams(
            dimension_semantics=("arbitrary",),
            vmem_limit_bytes=_vmem_limit(vmem_bytes)),
    )(xs, xq, wb, bb, w1, b1, w2, b2, labels)

    fdim = params["w1"].shape[1]
    return logits_pad[:nq, :n_classes], protos_pad[:n_classes, :fdim]


def _query_forward(params, query_images, prototypes):
    nq, c, h, w = query_images.shape
    chw = c * h * w
    hw = h * w
    fold_gap = chw <= GAP_FOLD_MAX_CHW
    pool_hw = None if fold_gap else hw
    nc, fdim = prototypes.shape

    row_tile = _pick_row_tile(nq, chw, n_image_inputs=1)
    n_rows = _round_up(nq, row_tile)
    grid = (n_rows // row_tile,)

    x = _flatten_pad_rows(query_images, n_rows)
    protos_pad = jnp.pad(prototypes.astype(jnp.float32),
                         ((0, NC_PAD - nc), (0, D_PAD - fdim)))
    # Hoist ||p||^2 out of the per-tile hot path: computed once, host side.
    p_sq = jnp.sum(protos_pad * protos_pad, axis=-1).reshape(1, NC_PAD)

    wb, bb, w1, b1, w2, b2 = _prepare_params(params, hw, fold_gap)

    const = lambda i: (0, 0)
    once = pl.Buffered(1)

    weight_bytes = (wb.size + bb.size + w1.size + b1.size + w2.size + b2.size) * 4
    vmem_bytes = (2 * row_tile * chw * 4
                  + weight_bytes
                  + (NC_PAD * D_PAD + 8 * NC_PAD) * 4
                  + 2 * row_tile * NC_PAD * 4)

    kernel = functools.partial(_query_kernel, pool_hw=pool_hw)
    logits_pad = pl.pallas_call(
        kernel,
        out_shape=jax.ShapeDtypeStruct((n_rows, NC_PAD), jnp.float32),
        grid_spec=pltpu.PrefetchScalarGridSpec(
            num_scalar_prefetch=0,
            grid=grid,
            in_specs=[
                pl.BlockSpec((row_tile, chw), lambda i: (i, 0)),
                pl.BlockSpec(wb.shape, const, pipeline_mode=once),
                pl.BlockSpec(bb.shape, const, pipeline_mode=once),
                pl.BlockSpec(w1.shape, const, pipeline_mode=once),
                pl.BlockSpec(b1.shape, const, pipeline_mode=once),
                pl.BlockSpec(w2.shape, const, pipeline_mode=once),
                pl.BlockSpec(b2.shape, const, pipeline_mode=once),
                pl.BlockSpec((NC_PAD, D_PAD), const, pipeline_mode=once),
                pl.BlockSpec((1, NC_PAD), const, pipeline_mode=once),
            ],
            out_specs=pl.BlockSpec((row_tile, NC_PAD), lambda i: (i, 0))),
        compiler_params=pltpu.CompilerParams(
            dimension_semantics=("parallel",),
            vmem_limit_bytes=_vmem_limit(vmem_bytes)),
    )(x, wb, bb, w1, b1, w2, b2, protos_pad, p_sq)
    return logits_pad[:nq, :nc]


def prototypical_forward(params, support_images=None, support_labels=None,
                         query_images=None, prototypes=None, n_classes=None):
    """Mirrors PrototypicalNetwork.forward: returns (logits, prototypes)."""
    if prototypes is None:
        if n_classes is None:
            # Prefer passing n_classes statically (no host sync).  Fallback is a
            # single max() sync; assumes labels remapped to [0, n_classes).
            n_classes = int(support_labels.max()) + 1
        logits, prototypes = _fused_forward(
            params, support_images, support_labels, query_images, n_classes)
        return logits, prototypes
    logits = _query_forward(params, query_images, prototypes)
    return logits, prototypes


# ----------------------------------------------------------------------------
# Demo
# ----------------------------------------------------------------------------
if __name__ == "__main__":
    key = jax.random.PRNGKey(0)
    k_s, k_q, kb, kbb, k1, kb1, k2, kb2 = jax.random.split(key, 8)

    C, H, W = 4, 16, 16
    n_classes, shots, n_query = 5, 2, 6

    support_images = jax.random.normal(
        k_s, (n_classes * shots, C, H, W), jnp.float32)
    query_images = jax.random.normal(k_q, (n_query, C, H, W), jnp.float32)
    support_labels = jnp.repeat(jnp.arange(n_classes, dtype=jnp.int32), shots)

    params = {
        "wb": 0.05 * jax.random.normal(kb, (C, BACKBONE_DIM), jnp.float32),
        "bb": 0.01 * jax.random.normal(kbb, (BACKBONE_DIM,), jnp.float32),
        "w1": 0.05 * jax.random.normal(k1, (BACKBONE_DIM, FEATURE_DIM), jnp.float32),
        "b1": 0.01 * jax.random.normal(kb1, (FEATURE_DIM,), jnp.float32),
        "w2": 0.05 * jax.random.normal(k2, (FEATURE_DIM, FEATURE_DIM), jnp.float32),
        "b2": 0.01 * jax.random.normal(kb2, (FEATURE_DIM,), jnp.float32),
    }

    # n_classes is known statically here (labels are arange-repeat) — no
    # host-blocking jnp.unique on the dispatch path.
    nc = n_classes

    # Path 1: prototypes computed from support set (fully fused kernel).
    logits, prototypes = prototypical_forward(
        params, support_images=support_images, support_labels=support_labels,
        query_images=query_images, n_classes=nc)

    # Path 2: prototypes supplied (query-only kernel).
    logits2, _ = prototypical_forward(params, query_images=query_images,
                                      prototypes=prototypes)
    jax.block_until_ready((logits, prototypes, logits2))

    # Pure-JAX reference (mirrors the PyTorch math) for a tolerance check.
    def _enc_ref(imgs):
        pooled = imgs.reshape(imgs.shape[0], C, H * W).mean(-1)
        f = jnp.maximum(pooled @ params["wb"] + params["bb"], 0.0)
        hh = jnp.maximum(f @ params["w1"] + params["b1"], 0.0)
        z = hh @ params["w2"] + params["b2"]
        nrm = jnp.sqrt(jnp.sum(z * z, -1, keepdims=True))
        return z / jnp.maximum(nrm, 1e-12)

    sf, qf = _enc_ref(support_images), _enc_ref(query_images)
    protos_ref = jnp.stack([sf[support_labels == c].mean(0) for c in range(nc)])
    d_ref = jnp.sqrt(jnp.sum((qf[:, None, :] - protos_ref[None, :, :]) ** 2, -1))

    assert logits.shape == (n_query, nc)
    assert prototypes.shape == (nc, FEATURE_DIM)
    assert bool(jnp.all(jnp.isfinite(logits)))
    assert bool(jnp.allclose(prototypes, protos_ref, atol=1e-4, rtol=1e-4))
    assert bool(jnp.allclose(logits, -d_ref, atol=1e-3, rtol=1e-3))
    assert bool(jnp.allclose(logits2, logits, atol=1e-3, rtol=1e-3))
    print("KERNEL_OK")
</pallas_src>

<mosaic_0001>
module attributes {stable_mosaic.version = 11 : i64} {
  func.func @_fused_kernel(%arg0: i32, %arg1: memref<16x1024xf32, #tpu.memory_space<vmem>>, %arg2: memref<16x1024xf32, #tpu.memory_space<vmem>>, %arg3: memref<1024x128xf32, #tpu.memory_space<vmem>>, %arg4: memref<1x128xf32, #tpu.memory_space<vmem>>, %arg5: memref<128x128xf32, #tpu.memory_space<vmem>>, %arg6: memref<1x128xf32, #tpu.memory_space<vmem>>, %arg7: memref<128x128xf32, #tpu.memory_space<vmem>>, %arg8: memref<1x128xf32, #tpu.memory_space<vmem>>, %arg9: memref<1x16xi32, #tpu.memory_space<vmem>>, %arg10: memref<16x128xf32, #tpu.memory_space<vmem>>, %arg11: memref<128x128xf32, #tpu.memory_space<vmem>>, %arg12: memref<32x128xf32, #tpu.memory_space<vmem>>) attributes {dimension_semantics = [#tpu.dimension_semantics<arbitrary>], iteration_bounds = array<i64: 2>, scalar_prefetch = 0 : i64, scratch_operands = 1 : i64, tpu.core_type = #tpu.core_type<tc>, window_params = [{transform_indices = @transform_0, window_bounds = array<i64: 16, 1024>}, {transform_indices = @transform_1, window_bounds = array<i64: 16, 1024>}, {pipeline_mode = #tpu.pipeline_mode<synchronous>, transform_indices = @transform_2, window_bounds = array<i64: 1024, 128>}, {pipeline_mode = #tpu.pipeline_mode<synchronous>, transform_indices = @transform_3, window_bounds = array<i64: 1, 128>}, {pipeline_mode = #tpu.pipeline_mode<synchronous>, transform_indices = @transform_4, window_bounds = array<i64: 128, 128>}, {pipeline_mode = #tpu.pipeline_mode<synchronous>, transform_indices = @transform_5, window_bounds = array<i64: 1, 128>}, {pipeline_mode = #tpu.pipeline_mode<synchronous>, transform_indices = @transform_6, window_bounds = array<i64: 128, 128>}, {pipeline_mode = #tpu.pipeline_mode<synchronous>, transform_indices = @transform_7, window_bounds = array<i64: 1, 128>}, {pipeline_mode = #tpu.pipeline_mode<synchronous>, transform_indices = @transform_8, window_bounds = array<i64: 1, 16>}, {pipeline_mode = #tpu.pipeline_mode<synchronous>, transform_indices = @transform_9, window_bounds = array<i64: 16, 128>}, {pipeline_mode = #tpu.pipeline_mode<synchronous>, transform_indices = @transform_10, window_bounds = array<i64: 128, 128>}]} {
    %c16_i32 = arith.constant 16 : i32
    %0 = arith.muli %arg0, %c16_i32 : i32
    %1 = tpu.assume_multiple %0, 8 : i32
    %c1_i32 = arith.constant 1 : i32
    %2 = arith.cmpi slt, %arg0, %c1_i32 : i32
    %3 = arith.extui %2 : i1 to i32
    %c0_i32 = arith.constant 0 : i32
    %4 = arith.cmpi ne, %3, %c0_i32 : i32
    scf.if %4 {
      %c0 = arith.constant 0 : index
      %c0_4 = arith.constant 0 : index
      %11 = vector.load %arg1[%c0, %c0_4] : memref<16x1024xf32, #tpu.memory_space<vmem>>, vector<16x1024xf32>
      %c0_5 = arith.constant 0 : index
      %c0_6 = arith.constant 0 : index
      %12 = vector.load %arg3[%c0_5, %c0_6] : memref<1024x128xf32, #tpu.memory_space<vmem>>, vector<1024x128xf32>
      %c0_7 = arith.constant 0 : index
      %c0_8 = arith.constant 0 : index
      %13 = vector.load %arg4[%c0_7, %c0_8] : memref<1x128xf32, #tpu.memory_space<vmem>>, vector<1x128xf32>
      %c0_9 = arith.constant 0 : index
      %c0_10 = arith.constant 0 : index
      %14 = vector.load %arg5[%c0_9, %c0_10] : memref<128x128xf32, #tpu.memory_space<vmem>>, vector<128x128xf32>
      %c0_11 = arith.constant 0 : index
      %c0_12 = arith.constant 0 : index
      %15 = vector.load %arg6[%c0_11, %c0_12] : memref<1x128xf32, #tpu.memory_space<vmem>>, vector<1x128xf32>
      %c0_13 = arith.constant 0 : index
      %c0_14 = arith.constant 0 : index
      %16 = vector.load %arg7[%c0_13, %c0_14] : memref<128x128xf32, #tpu.memory_space<vmem>>, vector<128x128xf32>
      %c0_15 = arith.constant 0 : index
      %c0_16 = arith.constant 0 : index
      %17 = vector.load %arg8[%c0_15, %c0_16] : memref<1x128xf32, #tpu.memory_space<vmem>>, vector<1x128xf32>
      %cst = arith.constant dense<0.000000e+00> : vector<16x128xf32>
      %18 = tpu.matmul %11, %12, %cst {dimension_numbers = #tpu.dot_dimension_numbers<[1], [0], [0], [1], [0, 0, 1, 1], [], []>} : vector<16x1024xf32>, vector<1024x128xf32>, vector<16x128xf32> -> vector<16x128xf32>
      %19 = vector.broadcast %13 : vector<1x128xf32> to vector<16x128xf32>
      %20 = arith.addf %18, %19 : vector<16x128xf32>
      %cst_17 = arith.constant 0.000000e+00 : f32
      %21 = vector.broadcast %cst_17 : f32 to vector<16x128xf32>
      %22 = arith.maximumf %20, %21 : vector<16x128xf32>
      %cst_18 = arith.constant dense<0.000000e+00> : vector<16x128xf32>
      %23 = tpu.matmul %22, %14, %cst_18 {dimension_numbers = #tpu.dot_dimension_numbers<[1], [0], [0], [1], [0, 0, 1, 1], [], []>} : vector<16x128xf32>, vector<128x128xf32>, vector<16x128xf32> -> vector<16x128xf32>
      %24 = vector.broadcast %15 : vector<1x128xf32> to vector<16x128xf32>
      %25 = arith.addf %23, %24 : vector<16x128xf32>
      %cst_19 = arith.constant 0.000000e+00 : f32
      %26 = vector.broadcast %cst_19 : f32 to vector<16x128xf32>
      %27 = arith.maximumf %25, %26 : vector<16x128xf32>
      %cst_20 = arith.constant dense<0.000000e+00> : vector<16x128xf32>
      %28 = tpu.matmul %27, %16, %cst_20 {dimension_numbers = #tpu.dot_dimension_numbers<[1], [0], [0], [1], [0, 0, 1, 1], [], []>} : vector<16x128xf32>, vector<128x128xf32>, vector<16x128xf32> -> vector<16x128xf32>
      %29 = vector.broadcast %17 : vector<1x128xf32> to vector<16x128xf32>
      %30 = arith.addf %28, %29 : vector<16x128xf32>
      %31 = arith.mulf %30, %30 : vector<16x128xf32>
      %cst_21 = arith.constant dense<0.000000e+00> : vector<16xf32>
      %32 = vector.multi_reduction <add>, %31, %cst_21 [1] : vector<16x128xf32> to vector<16xf32>
      %33 = vector.shape_cast %32 : vector<16xf32> to vector<16x1xf32>
      %cst_22 = arith.constant 1.000000e-24 : f32
      %34 = vector.broadcast %cst_22 : f32 to vector<16x1xf32>
      %35 = arith.maximumf %33, %34 : vector<16x1xf32>
      %36 = math.rsqrt %35 : vector<16x1xf32>
      %37 = vector.broadcast %36 : vector<16x1xf32> to vector<16x128xf32>
      %38 = arith.mulf %30, %37 : vector<16x128xf32>
      %39 = arith.index_cast %1 : i32 to index
      %c0_23 = arith.constant 0 : index
      %40 = vector.load %arg12[%39, %c0_23] : memref<32x128xf32, #tpu.memory_space<vmem>>, vector<16x128xf32>
      tpu.vector_store %arg12[%39, %c0_23], %38 {strides = array<i32>} : memref<32x128xf32, #tpu.memory_space<vmem>>, vector<16x128xf32>,
    } else {
    }
    %c1_i32_0 = arith.constant 1 : i32
    %5 = arith.cmpi sge, %arg0, %c1_i32_0 : i32
    %6 = arith.extui %5 : i1 to i32
    %c0_i32_1 = arith.constant 0 : i32
    %7 = arith.cmpi ne, %6, %c0_i32_1 : i32
    scf.if %7 {
      %c0 = arith.constant 0 : index
      %c0_4 = arith.constant 0 : index
      %11 = vector.load %arg2[%c0, %c0_4] : memref<16x1024xf32, #tpu.memory_space<vmem>>, vector<16x1024xf32>
      %c0_5 = arith.constant 0 : index
      %c0_6 = arith.constant 0 : index
      %12 = vector.load %arg3[%c0_5, %c0_6] : memref<1024x128xf32, #tpu.memory_space<vmem>>, vector<1024x128xf32>
      %c0_7 = arith.constant 0 : index
      %c0_8 = arith.constant 0 : index
      %13 = vector.load %arg4[%c0_7, %c0_8] : memref<1x128xf32, #tpu.memory_space<vmem>>, vector<1x128xf32>
      %c0_9 = arith.constant 0 : index
      %c0_10 = arith.constant 0 : index
      %14 = vector.load %arg5[%c0_9, %c0_10] : memref<128x128xf32, #tpu.memory_space<vmem>>, vector<128x128xf32>
      %c0_11 = arith.constant 0 : index
      %c0_12 = arith.constant 0 : index
      %15 = vector.load %arg6[%c0_11, %c0_12] : memref<1x128xf32, #tpu.memory_space<vmem>>, vector<1x128xf32>
      %c0_13 = arith.constant 0 : index
      %c0_14 = arith.constant 0 : index
      %16 = vector.load %arg7[%c0_13, %c0_14] : memref<128x128xf32, #tpu.memory_space<vmem>>, vector<128x128xf32>
      %c0_15 = arith.constant 0 : index
      %c0_16 = arith.constant 0 : index
      %17 = vector.load %arg8[%c0_15, %c0_16] : memref<1x128xf32, #tpu.memory_space<vmem>>, vector<1x128xf32>
      %cst = arith.constant dense<0.000000e+00> : vector<16x128xf32>
      %18 = tpu.matmul %11, %12, %cst {dimension_numbers = #tpu.dot_dimension_numbers<[1], [0], [0], [1], [0, 0, 1, 1], [], []>} : vector<16x1024xf32>, vector<1024x128xf32>, vector<16x128xf32> -> vector<16x128xf32>
      %19 = vector.broadcast %13 : vector<1x128xf32> to vector<16x128xf32>
      %20 = arith.addf %18, %19 : vector<16x128xf32>
      %cst_17 = arith.constant 0.000000e+00 : f32
      %21 = vector.broadcast %cst_17 : f32 to vector<16x128xf32>
      %22 = arith.maximumf %20, %21 : vector<16x128xf32>
      %cst_18 = arith.constant dense<0.000000e+00> : vector<16x128xf32>
      %23 = tpu.matmul %22, %14, %cst_18 {dimension_numbers = #tpu.dot_dimension_numbers<[1], [0], [0], [1], [0, 0, 1, 1], [], []>} : vector<16x128xf32>, vector<128x128xf32>, vector<16x128xf32> -> vector<16x128xf32>
      %24 = vector.broadcast %15 : vector<1x128xf32> to vector<16x128xf32>
      %25 = arith.addf %23, %24 : vector<16x128xf32>
      %cst_19 = arith.constant 0.000000e+00 : f32
      %26 = vector.broadcast %cst_19 : f32 to vector<16x128xf32>
      %27 = arith.maximumf %25, %26 : vector<16x128xf32>
      %cst_20 = arith.constant dense<0.000000e+00> : vector<16x128xf32>
      %28 = tpu.matmul %27, %16, %cst_20 {dimension_numbers = #tpu.dot_dimension_numbers<[1], [0], [0], [1], [0, 0, 1, 1], [], []>} : vector<16x128xf32>, vector<128x128xf32>, vector<16x128xf32> -> vector<16x128xf32>
      %29 = vector.broadcast %17 : vector<1x128xf32> to vector<16x128xf32>
      %30 = arith.addf %28, %29 : vector<16x128xf32>
      %31 = arith.mulf %30, %30 : vector<16x128xf32>
      %cst_21 = arith.constant dense<0.000000e+00> : vector<16xf32>
      %32 = vector.multi_reduction <add>, %31, %cst_21 [1] : vector<16x128xf32> to vector<16xf32>
      %33 = vector.shape_cast %32 : vector<16xf32> to vector<16x1xf32>
      %cst_22 = arith.constant 1.000000e-24 : f32
      %34 = vector.broadcast %cst_22 : f32 to vector<16x1xf32>
      %35 = arith.maximumf %33, %34 : vector<16x1xf32>
      %36 = math.rsqrt %35 : vector<16x1xf32>
      %37 = vector.broadcast %36 : vector<16x1xf32> to vector<16x128xf32>
      %38 = arith.mulf %30, %37 : vector<16x128xf32>
      %39 = arith.index_cast %1 : i32 to index
      %c0_23 = arith.constant 0 : index
      %40 = vector.load %arg12[%39, %c0_23] : memref<32x128xf32, #tpu.memory_space<vmem>>, vector<16x128xf32>
      tpu.vector_store %arg12[%39, %c0_23], %38 {strides = array<i32>} : memref<32x128xf32, #tpu.memory_space<vmem>>, vector<16x128xf32>,
    } else {
    }
    %c1_i32_2 = arith.constant 1 : i32
    %8 = arith.cmpi eq, %arg0, %c1_i32_2 : i32
    %9 = arith.extui %8 : i1 to i32
    %c0_i32_3 = arith.constant 0 : i32
    %10 = arith.cmpi ne, %9, %c0_i32_3 : i32
    scf.if %10 {
      %c0 = arith.constant 0 : index
      %c0_4 = arith.constant 0 : index
      %11 = vector.load %arg12[%c0, %c0_4] : memref<32x128xf32, #tpu.memory_space<vmem>>, vector<16x128xf32>
      %c16 = arith.constant 16 : index
      %c0_5 = arith.constant 0 : index
      %12 = vector.load %arg12[%c16, %c0_5] : memref<32x128xf32, #tpu.memory_space<vmem>>, vector<16x128xf32>
      %c0_6 = arith.constant 0 : index
      %c0_7 = arith.constant 0 : index
      %13 = vector.load %arg9[%c0_6, %c0_7] : memref<1x16xi32, #tpu.memory_space<vmem>>, vector<1x16xi32>
      %14 = tpu.iota {dimensions = array<i32: 0>} : vector<128x16xi32>
      %15 = vector.broadcast %13 : vector<1x16xi32> to vector<128x16xi32>
      %16 = arith.cmpi eq, %15, %14 : vector<128x16xi32>
      %17 = arith.extui %16 : vector<128x16xi1> to vector<128x16xi32>
      %18 = arith.sitofp %17 : vector<128x16xi32> to vector<128x16xf32>
      %cst = arith.constant dense<0.000000e+00> : vector<128x128xf32>
      %19 = tpu.matmul %18, %11, %cst {dimension_numbers = #tpu.dot_dimension_numbers<[1], [0], [0], [1], [0, 0, 1, 1], [], []>} : vector<128x16xf32>, vector<16x128xf32>, vector<128x128xf32> -> vector<128x128xf32>
      %cst_8 = arith.constant dense<0.000000e+00> : vector<128xf32>
      %20 = vector.multi_reduction <add>, %18, %cst_8 [1] : vector<128x16xf32> to vector<128xf32>
      %21 = vector.shape_cast %20 : vector<128xf32> to vector<128x1xf32>
      %cst_9 = arith.constant 1.000000e+00 : f32
      %22 = vector.broadcast %cst_9 : f32 to vector<128x1xf32>
      %23 = arith.maximumf %21, %22 : vector<128x1xf32>
      %24 = vector.broadcast %23 : vector<128x1xf32> to vector<128x128xf32>
      %25 = arith.divf %19, %24 : vector<128x128xf32>
      %c0_10 = arith.constant 0 : index
      %c0_11 = arith.constant 0 : index
      %26 = vector.load %arg11[%c0_10, %c0_11] : memref<128x128xf32, #tpu.memory_space<vmem>>, vector<128x128xf32>
      tpu.vector_store %arg11[%c0_10, %c0_11], %25 {strides = array<i32>} : memref<128x128xf32, #tpu.memory_space<vmem>>, vector<128x128xf32>,
      %cst_12 = arith.constant 1.000000e+00 : f32
      %27 = vector.broadcast %cst_12 : f32 to vector<1x128xf32>
      %28 = arith.mulf %25, %25 : vector<128x128xf32>
      %cst_13 = arith.constant dense<0.000000e+00> : vector<1x128xf32>
      %29 = tpu.matmul %27, %28, %cst_13 {dimension_numbers = #tpu.dot_dimension_numbers<[1], [1], [0], [0], [0, 0, 1, 0], [], []>} : vector<1x128xf32>, vector<128x128xf32>, vector<1x128xf32> -> vector<1x128xf32>
      %cst_14 = arith.constant dense<0.000000e+00> : vector<16x128xf32>
      %30 = tpu.matmul %12, %25, %cst_14 {dimension_numbers = #tpu.dot_dimension_numbers<[1], [1], [0], [0], [0, 0, 1, 0], [], []>} : vector<16x128xf32>, vector<128x128xf32>, vector<16x128xf32> -> vector<16x128xf32>
      %cst_15 = arith.constant 1.000000e+00 : f32
      %31 = vector.broadcast %cst_15 : f32 to vector<1x128xf32>
      %32 = arith.addf %31, %29 : vector<1x128xf32>
      %cst_16 = arith.constant 2.000000e+00 : f32
      %33 = vector.broadcast %cst_16 : f32 to vector<16x128xf32>
      %34 = arith.mulf %33, %30 : vector<16x128xf32>
      %35 = vector.broadcast %32 : vector<1x128xf32> to vector<16x128xf32>
      %36 = arith.subf %35, %34 : vector<16x128xf32>
      %cst_17 = arith.constant 0.000000e+00 : f32
      %37 = vector.broadcast %cst_17 : f32 to vector<16x128xf32>
      %38 = arith.maximumf %36, %37 : vector<16x128xf32>
      %39 = math.sqrt %38 : vector<16x128xf32>
      %cst_18 = arith.constant 0.000000e+00 : f32
      %40 = vector.broadcast %cst_18 : f32 to vector<16x128xf32>
      %41 = arith.subf %40, %39 : vector<16x128xf32>
      %c0_19 = arith.constant 0 : index
      %c0_20 = arith.constant 0 : index
      %42 = vector.load %arg10[%c0_19, %c0_20] : memref<16x128xf32, #tpu.memory_space<vmem>>, vector<16x128xf32>
      tpu.vector_store %arg10[%c0_19, %c0_20], %41 {strides = array<i32>} : memref<16x128xf32, #tpu.memory_space<vmem>>, vector<16x128xf32>,
    } else {
    }
    return
  }
  func.func @transform_0(%arg0: i32) -> (i32, i32) {
    %c0_i32 = arith.constant 0 : i32
    %0 = arith.minsi %arg0, %c0_i32 : i32
    %c0_i32_0 = arith.constant 0 : i32
    %c0_i32_1 = arith.constant 0 : i32
    return %0, %c0_i32_0 : i32, i32
  }
  func.func @transform_1(%arg0: i32) -> (i32, i32) {
    %c1_i32 = arith.constant 1 : i32
    %0 = arith.subi %arg0, %c1_i32 : i32
    %c0_i32 = arith.constant 0 : i32
    %1 = arith.maxsi %0, %c0_i32 : i32
    %c0_i32_0 = arith.constant 0 : i32
    %c0_i32_1 = arith.constant 0 : i32
    return %1, %c0_i32_0 : i32, i32
  }
  func.func @transform_2(%arg0: i32) -> (i32, i32) {
    %c0_i32 = arith.constant 0 : i32
    %c0_i32_0 = arith.constant 0 : i32
    %c0_i32_1 = arith.constant 0 : i32
    return %c0_i32, %c0_i32_0 : i32, i32
  }
  func.func @transform_3(%arg0: i32) -> (i32, i32) {
    %c0_i32 = arith.constant 0 : i32
    %c0_i32_0 = arith.constant 0 : i32
    %c0_i32_1 = arith.constant 0 : i32
    return %c0_i32, %c0_i32_0 : i32, i32
  }
  func.func @transform_4(%arg0: i32) -> (i32, i32) {
    %c0_i32 = arith.constant 0 : i32
    %c0_i32_0 = arith.constant 0 : i32
    %c0_i32_1 = arith.constant 0 : i32
    return %c0_i32, %c0_i32_0 : i32, i32
  }
  func.func @transform_5(%arg0: i32) -> (i32, i32) {
    %c0_i32 = arith.constant 0 : i32
    %c0_i32_0 = arith.constant 0 : i32
    %c0_i32_1 = arith.constant 0 : i32
    return %c0_i32, %c0_i32_0 : i32, i32
  }
  func.func @transform_6(%arg0: i32) -> (i32, i32) {
    %c0_i32 = arith.constant 0 : i32
    %c0_i32_0 = arith.constant 0 : i32
    %c0_i32_1 = arith.constant 0 : i32
    return %c0_i32, %c0_i32_0 : i32, i32
  }
  func.func @transform_7(%arg0: i32) -> (i32, i32) {
    %c0_i32 = arith.constant 0 : i32
    %c0_i32_0 = arith.constant 0 : i32
    %c0_i32_1 = arith.constant 0 : i32
    return %c0_i32, %c0_i32_0 : i32, i32
  }
  func.func @transform_8(%arg0: i32) -> (i32, i32) {
    %c0_i32 = arith.constant 0 : i32
    %c0_i32_0 = arith.constant 0 : i32
    %c0_i32_1 = arith.constant 0 : i32
    return %c0_i32, %c0_i32_0 : i32, i32
  }
  func.func @transform_9(%arg0: i32) -> (i32, i32) {
    %c0_i32 = arith.constant 0 : i32
    %c0_i32_0 = arith.constant 0 : i32
    %c0_i32_1 = arith.constant 0 : i32
    return %c0_i32, %c0_i32_0 : i32, i32
  }
  func.func @transform_10(%arg0: i32) -> (i32, i32) {
    %c0_i32 = arith.constant 0 : i32
    %c0_i32_0 = arith.constant 0 : i32
    %c0_i32_1 = arith.constant 0 : i32
    return %c0_i32, %c0_i32_0 : i32, i32
  }
}

</mosaic_0001>

<llo_original>
// kernel: tpu_custom_call.1
$region0: #{tpu_custom_call.1}
  #allocation0 [shape = 'u32[]', space=smem, size = 0x4, offset = 0x4, fixed_abs, tag = 'smem constant byte address 0x4 - core index']
  #allocation1 [shape = 'u32[72,128]{1,0:T(1,128)}', space=vmem, size = 0x9000, scoped, tag = 'internal scratch']
  #allocation2 [shape = 'f32[32,128]{1,0:T(8,128)}', space=vmem, size = 0x4000, scoped, tag = 'scratch operand']
  %s0 = inlined_call_operand.hbm [shape: f32[16,1024], index: 0, kind: input, shape index: {}]
  %s1 = inlined_call_operand.hbm [shape: f32[16,1024], index: 1, kind: input, shape index: {}]
  %s2 = inlined_call_operand.hbm [shape: f32[1024,128], index: 2, kind: input, shape index: {}]
  %s3 = inlined_call_operand.vmem [shape: f32[1,128], index: 3, kind: input, shape index: {}]
  %s4 = inlined_call_operand.hbm [shape: f32[128,128], index: 4, kind: input, shape index: {}]
  %s5 = inlined_call_operand.vmem [shape: f32[1,128], index: 5, kind: input, shape index: {}]
  %s6 = inlined_call_operand.hbm [shape: f32[128,128], index: 6, kind: input, shape index: {}]
  %s7 = inlined_call_operand.vmem [shape: f32[1,128], index: 7, kind: input, shape index: {}]
  %s8 = inlined_call_operand.vmem [shape: s32[1,16], index: 8, kind: input, shape index: {}]
  %s9 = inlined_call_operand.hbm [shape: f32[16,128], index: 9, kind: output, shape index: {0}]
  %s10 = inlined_call_operand.hbm [shape: f32[128,128], index: 10, kind: output, shape index: {1}]
  %11 = xla_tuple %s9, %s10
  %s12 = sld [smem:[#allocation0]]
  $region109: #{tpu_custom_call.1} parent=0
    _
  %s14 = ssub.s32 1, %s12
  %s15 = scalar_select 0, %s14, %s12
  $region1: #{tpu_custom_call.1} parent=0
    #allocation3 [shape = 'u8[131072]{0}', space=vmem, size = 0x20000, scoped, tag = 'input window, operand 0']
    #allocation4 [shape = 's32[2]{0}', space=sflag, size = 0x8, scoped, tag = 'scoped memory for tpu_custom_call.1']
    #allocation5 [shape = 's32[2]{0}', space=sflag, size = 0x8, scoped, tag = 'scoped memory for tpu_custom_call.1']
    #allocation6 [shape = 'u8[131072]{0}', space=vmem, size = 0x20000, scoped, tag = 'input window, operand 1']
    #allocation7 [shape = 's32[2]{0}', space=sflag, size = 0x8, scoped, tag = 'scoped memory for tpu_custom_call.1']
    #allocation8 [shape = 'u8[524288]{0}', space=vmem, size = 0x80000, scoped, tag = 'input window, operand 2, single buffered']
    #allocation9 [shape = 'u8[65536]{0}', space=vmem, size = 0x10000, scoped, tag = 'input window, operand 4, single buffered']
    #allocation10 [shape = 's32[1]{0}', space=sflag, size = 0x4, scoped, tag = 'scoped memory for tpu_custom_call.1']
    #allocation11 [shape = 'u8[65536]{0}', space=vmem, size = 0x10000, scoped, tag = 'input window, operand 6, single buffered']
    #allocation12 [shape = 'u8[8192]{0}', space=vmem, size = 0x2000, scoped, tag = 'output window, operand 0, single buffered']
    #allocation13 [shape = 'u8[65536]{0}', space=vmem, size = 0x10000, scoped, tag = 'output window, operand 1, single buffered']
    #allocation14 [shape = 's32[1]{0}', space=sflag, size = 0x4, scoped, tag = 'scoped memory for tpu_custom_call.1']
    %16 = vsyncpa [#allocation4], 0
    %s17 = scalar_lea.sflag [#allocation4], 1
    %18 = vsyncpa %s17, 0
    %19 = vsyncpa [#allocation7], 0
    %s20 = scalar_lea.sflag [#allocation7], 1
    %21 = vsyncpa %s20, 0
    %22 = vsyncpa [#allocation10], 0
    %23 = vsyncpa [#allocation5], 0
    %24 = vsyncpa [#allocation14], 0
    loop: start=0, step=1, limit=4
    $region2: #{tpu_custom_call.1} parent=1 // loop_pre_header
      _
    $region3: #{tpu_custom_call.1} parent=1 // loop_header
      %s26 = sphi 0, %s30
      %p27 = scmp.ge.s32.totalorder %s26, 4
      %s40 = sphi 0, %s42
      %s43 = sphi 0, %s40
      %s44 = sphi 0, %s43
      %s60 = sphi 0, %s44
      %s72 = sphi 0, %s74
      %s75 = sphi 0, %s72
      %s76 = sphi 0, %s75
      %s92 = sphi 0, %s76
      %s96 = sphi 0, %s96
      %s98 = sphi 0, %s96
      %s99 = sphi 0, %s98
      %s113 = sphi 0, %s99
      %s117 = sphi 0, %s117
      %s119 = sphi 0, %s117
      %s120 = sphi 0, %s119
      %s134 = sphi 0, %s120
      %s138 = sphi 0, %s138
      %s140 = sphi 0, %s138
      %s141 = sphi 0, %s140
      %s155 = sphi 0, %s141
      %s159 = sphi 0, %s159
      %s161 = sphi 0, %s159
      %s162 = sphi 0, %s161
      %s176 = sphi 0, %s162
      %s180 = sphi 0, %s180
      %s182 = sphi 0, %s180
      %s183 = sphi 0, %s182
      %s197 = sphi 0, %s183
      %s201 = sphi 0, %s201
      %s203 = sphi 0, %s201
      %s204 = sphi 0, %s203
      %s218 = sphi 0, %s204
      %s222 = sphi 0, %s222
      %s224 = sphi 0, %s222
      %s225 = sphi 0, %s224
      %s239 = sphi 0, %s225
      %s243 = sphi 0, %s243
      %s245 = sphi 0, %s243
      %s246 = sphi 0, %s245
      %s260 = sphi 0, %s246
      %s264 = sphi 0, %s264
      %s266 = sphi 0, %s264
      %s267 = sphi 0, %s266
      %s281 = sphi 0, %s267
    $region4: #{tpu_custom_call.1} parent=1 // loop_header_branch
      %29 = sbr.rel (%p27) target = $region8
    $region5: #{tpu_custom_call.1} parent=1 // loop_body
      %s31 = ssub.s32 %s26, 1
      %s32 = ssub.s32 %s26, 2
      %s33 = sadd.s32 %s26, 1
      %p34 = scmp.lt.s32.totalorder %s26, 0
      %s35 = scalar_select %p34, %s26, 0
      %p36 = scmp.lt.s32.totalorder %s33, 0
      %s37 = scalar_select %p36, %s33, 0
      %s38 = ssub.s32 %s35, %s37
      %p39 = scmp.eq.s32.totalorder %s38, 0
      %s41 = sadd.s32 %s40, 1
      %s42 = scalar_select %p39, %s40, %s41
      %p45 = pneg %p39
      %p46 = scmp.eq.s32.totalorder %s26, 1
      %p47 = por %p45, %p46
      %p48 = scmp.ne.s32.totalorder %s40, %s43
      %p49 = scmp.eq.s32.totalorder %s26, 0
      %p50 = por %p48, %p49
      %p51 = scmp.ne.s32.totalorder %s40, %s43
      %p52 = scmp.eq.s32.totalorder %s31, 1
      %p53 = por %p51, %p52
      %p54 = scmp.ne.s32.totalorder %s43, %s44
      %p55 = scmp.eq.s32.totalorder %s31, 0
      %p56 = por %p54, %p55
      %p57 = scmp.ne.s32.totalorder %s43, %s44
      %p58 = scmp.eq.s32.totalorder %s32, 1
      %p59 = por %p57, %p58
      %p61 = scmp.ne.s32.totalorder %s44, %s60
      %p62 = scmp.eq.s32.totalorder %s32, 0
      %p63 = por %p61, %p62
      %s64 = ssub.s32 %s26, 1
      %p65 = scmp.gt.s32.totalorder %s64, 0
      %s66 = scalar_select %p65, %s64, 0
      %s67 = ssub.s32 %s33, 1
      %p68 = scmp.gt.s32.totalorder %s67, 0
      %s69 = scalar_select %p68, %s67, 0
      %s70 = ssub.s32 %s66, %s69
      %p71 = scmp.eq.s32.totalorder %s70, 0
      %s73 = sadd.s32 %s72, 1
      %s74 = scalar_select %p71, %s72, %s73
      %p77 = pneg %p71
      %p78 = scmp.eq.s32.totalorder %s26, 1
      %p79 = por %p77, %p78
      %p80 = scmp.ne.s32.totalorder %s72, %s75
      %p81 = scmp.eq.s32.totalorder %s26, 0
      %p82 = por %p80, %p81
      %p83 = scmp.ne.s32.totalorder %s72, %s75
      %p84 = scmp.eq.s32.totalorder %s31, 1
      %p85 = por %p83, %p84
      %p86 = scmp.ne.s32.totalorder %s75, %s76
      %p87 = scmp.eq.s32.totalorder %s31, 0
      %p88 = por %p86, %p87
      %p89 = scmp.ne.s32.totalorder %s75, %s76
      %p90 = scmp.eq.s32.totalorder %s32, 1
      %p91 = por %p89, %p90
      %p93 = scmp.ne.s32.totalorder %s76, %s92
      %p94 = scmp.eq.s32.totalorder %s32, 0
      %p95 = por %p93, %p94
      %s97 = sadd.s32 %s96, 1
      %p100 = scmp.eq.s32.totalorder %s26, 1
      %p101 = scmp.ne.s32.totalorder %s96, %s98
      %p102 = scmp.eq.s32.totalorder %s26, 0
      %p103 = por %p101, %p102
      %p104 = scmp.ne.s32.totalorder %s96, %s98
      %p105 = scmp.eq.s32.totalorder %s31, 1
      %p106 = por %p104, %p105
      %p107 = scmp.ne.s32.totalorder %s98, %s99
      %p108 = scmp.eq.s32.totalorder %s31, 0
      %p109 = por %p107, %p108
      %p110 = scmp.ne.s32.totalorder %s98, %s99
      %p111 = scmp.eq.s32.totalorder %s32, 1
      %p112 = por %p110, %p111
      %p114 = scmp.ne.s32.totalorder %s99, %s113
      %p115 = scmp.eq.s32.totalorder %s32, 0
      %p116 = por %p114, %p115
      %s118 = sadd.s32 %s117, 1
      %p121 = scmp.eq.s32.totalorder %s26, 1
      %p122 = scmp.ne.s32.totalorder %s117, %s119
      %p123 = scmp.eq.s32.totalorder %s26, 0
      %p124 = por %p122, %p123
      %p125 = scmp.ne.s32.totalorder %s117, %s119
      %p126 = scmp.eq.s32.totalorder %s31, 1
      %p127 = por %p125, %p126
      %p128 = scmp.ne.s32.totalorder %s119, %s120
      %p129 = scmp.eq.s32.totalorder %s31, 0
      %p130 = por %p128, %p129
      %p131 = scmp.ne.s32.totalorder %s119, %s120
      %p132 = scmp.eq.s32.totalorder %s32, 1
      %p133 = por %p131, %p132
      %p135 = scmp.ne.s32.totalorder %s120, %s134
      %p136 = scmp.eq.s32.totalorder %s32, 0
      %p137 = por %p135, %p136
      %s139 = sadd.s32 %s138, 1
      %p142 = scmp.eq.s32.totalorder %s26, 1
      %p143 = scmp.ne.s32.totalorder %s138, %s140
      %p144 = scmp.eq.s32.totalorder %s26, 0
      %p145 = por %p143, %p144
      %p146 = scmp.ne.s32.totalorder %s138, %s140
      %p147 = scmp.eq.s32.totalorder %s31, 1
      %p148 = por %p146, %p147
      %p149 = scmp.ne.s32.totalorder %s140, %s141
      %p150 = scmp.eq.s32.totalorder %s31, 0
      %p151 = por %p149, %p150
      %p152 = scmp.ne.s32.totalorder %s140, %s141
      %p153 = scmp.eq.s32.totalorder %s32, 1
      %p154 = por %p152, %p153
      %p156 = scmp.ne.s32.totalorder %s141, %s155
      %p157 = scmp.eq.s32.totalorder %s32, 0
      %p158 = por %p156, %p157
      %s160 = sadd.s32 %s159, 1
      %p163 = scmp.eq.s32.totalorder %s26, 1
      %p164 = scmp.ne.s32.totalorder %s159, %s161
      %p165 = scmp.eq.s32.totalorder %s26, 0
      %p166 = por %p164, %p165
      %p167 = scmp.ne.s32.totalorder %s159, %s161
      %p168 = scmp.eq.s32.totalorder %s31, 1
      %p169 = por %p167, %p168
      %p170 = scmp.ne.s32.totalorder %s161, %s162
      %p171 = scmp.eq.s32.totalorder %s31, 0
      %p172 = por %p170, %p171
      %p173 = scmp.ne.s32.totalorder %s161, %s162
      %p174 = scmp.eq.s32.totalorder %s32, 1
      %p175 = por %p173, %p174
      %p177 = scmp.ne.s32.totalorder %s162, %s176
      %p178 = scmp.eq.s32.totalorder %s32, 0
      %p179 = por %p177, %p178
      %s181 = sadd.s32 %s180, 1
      %p184 = scmp.eq.s32.totalorder %s26, 1
      %p185 = scmp.ne.s32.totalorder %s180, %s182
      %p186 = scmp.eq.s32.totalorder %s26, 0
      %p187 = por %p185, %p186
      %p188 = scmp.ne.s32.totalorder %s180, %s182
      %p189 = scmp.eq.s32.totalorder %s31, 1
      %p190 = por %p188, %p189
      %p191 = scmp.ne.s32.totalorder %s182, %s183
      %p192 = scmp.eq.s32.totalorder %s31, 0
      %p193 = por %p191, %p192
      %p194 = scmp.ne.s32.totalorder %s182, %s183
      %p195 = scmp.eq.s32.totalorder %s32, 1
      %p196 = por %p194, %p195
      %p198 = scmp.ne.s32.totalorder %s183, %s197
      %p199 = scmp.eq.s32.totalorder %s32, 0
      %p200 = por %p198, %p199
      %s202 = sadd.s32 %s201, 1
      %p205 = scmp.eq.s32.totalorder %s26, 1
      %p206 = scmp.ne.s32.totalorder %s201, %s203
      %p207 = scmp.eq.s32.totalorder %s26, 0
      %p208 = por %p206, %p207
      %p209 = scmp.ne.s32.totalorder %s201, %s203
      %p210 = scmp.eq.s32.totalorder %s31, 1
      %p211 = por %p209, %p210
      %p212 = scmp.ne.s32.totalorder %s203, %s204
      %p213 = scmp.eq.s32.totalorder %s31, 0
      %p214 = por %p212, %p213
      %p215 = scmp.ne.s32.totalorder %s203, %s204
      %p216 = scmp.eq.s32.totalorder %s32, 1
      %p217 = por %p215, %p216
      %p219 = scmp.ne.s32.totalorder %s204, %s218
      %p220 = scmp.eq.s32.totalorder %s32, 0
      %p221 = por %p219, %p220
      %s223 = sadd.s32 %s222, 1
      %p226 = scmp.eq.s32.totalorder %s26, 1
      %p227 = scmp.ne.s32.totalorder %s222, %s224
      %p228 = scmp.eq.s32.totalorder %s26, 0
      %p229 = por %p227, %p228
      %p230 = scmp.ne.s32.totalorder %s222, %s224
      %p231 = scmp.eq.s32.totalorder %s31, 1
      %p232 = por %p230, %p231
      %p233 = scmp.ne.s32.totalorder %s224, %s225
      %p234 = scmp.eq.s32.totalorder %s31, 0
      %p235 = por %p233, %p234
      %p236 = scmp.ne.s32.totalorder %s224, %s225
      %p237 = scmp.eq.s32.totalorder %s32, 1
      %p238 = por %p236, %p237
      %p240 = scmp.ne.s32.totalorder %s225, %s239
      %p241 = scmp.eq.s32.totalorder %s32, 0
      %p242 = por %p240, %p241
      %s244 = sadd.s32 %s243, 1
      %p247 = scmp.eq.s32.totalorder %s26, 1
      %p248 = scmp.ne.s32.totalorder %s243, %s245
      %p249 = scmp.eq.s32.totalorder %s26, 0
      %p250 = por %p248, %p249
      %p251 = scmp.ne.s32.totalorder %s243, %s245
      %p252 = scmp.eq.s32.totalorder %s31, 1
      %p253 = por %p251, %p252
      %p254 = scmp.ne.s32.totalorder %s245, %s246
      %p255 = scmp.eq.s32.totalorder %s31, 0
      %p256 = por %p254, %p255
      %p257 = scmp.ne.s32.totalorder %s245, %s246
      %p258 = scmp.eq.s32.totalorder %s32, 1
      %p259 = por %p257, %p258
      %p261 = scmp.ne.s32.totalorder %s246, %s260
      %p262 = scmp.eq.s32.totalorder %s32, 0
      %p263 = por %p261, %p262
      %s265 = sadd.s32 %s264, 1
      %p268 = scmp.eq.s32.totalorder %s26, 1
      %p269 = scmp.ne.s32.totalorder %s264, %s266
      %p270 = scmp.eq.s32.totalorder %s26, 0
      %p271 = por %p269, %p270
      %p272 = scmp.ne.s32.totalorder %s264, %s266
      %p273 = scmp.eq.s32.totalorder %s31, 1
      %p274 = por %p272, %p273
      %p275 = scmp.ne.s32.totalorder %s266, %s267
      %p276 = scmp.eq.s32.totalorder %s31, 0
      %p277 = por %p275, %p276
      %p278 = scmp.ne.s32.totalorder %s266, %s267
      %p279 = scmp.eq.s32.totalorder %s32, 1
      %p280 = por %p278, %p279
      %p282 = scmp.ne.s32.totalorder %s267, %s281
      %p283 = scmp.eq.s32.totalorder %s32, 0
      %p284 = por %p282, %p283
      %p285 = scmp.le.s32.totalorder 1, %s26
      %p286 = scmp.lt.s32.totalorder %s26, 3
      %p287 = pnand %p285, %p286
      %p288 = pneg %p287
      // Predicated region
      $region9: #{tpu_custom_call.1} parent=5 // pred_check
        _
      $region10: #{tpu_custom_call.1} parent=5 // pred_check_branch
        %290 = sbr.rel (%p287) target = $region12
      $region11: #{tpu_custom_call.1} parent=5 // pred_region
        %s291 = ssub.s32 %s26, 1
        // Predicated region
        $region13: #{tpu_custom_call.1} parent=11 // pred_check
          %p292 = pneg %p109
        $region14: #{tpu_custom_call.1} parent=11 // pred_check_branch
          %294 = sbr.rel (%p292) target = $region16
        $region15: #{tpu_custom_call.1} parent=11 // pred_region
          %296 = vsyncadd [#allocation7], 0
          %s297 = sshll.u32 %s2, 4
          %s298 = int_to_ptr.hbm [resolvable:$true] %s297
          %s299 = sshll.u32 [#allocation8], 4
          %s300 = int_to_ptr.vmem [resolvable:$true] %s299
          %305 = dma.hbm_to_vmem [thread:$0]  %s298, 16384, %s300, [#allocation7], 128, 128, 8
        $region16: #{tpu_custom_call.1} parent=11 // pred_fallthru
          _
        // Predicated region
        $region17: #{tpu_custom_call.1} parent=11 // pred_check
          %p306 = pneg %p130
        $region18: #{tpu_custom_call.1} parent=11 // pred_check_branch
          %308 = sbr.rel (%p306) target = $region20
        $region19: #{tpu_custom_call.1} parent=11 // pred_region
          _
        $region20: #{tpu_custom_call.1} parent=11 // pred_fallthru
          _
        // Predicated region
        $region21: #{tpu_custom_call.1} parent=11 // pred_check
          %p309 = pneg %p151
        $region22: #{tpu_custom_call.1} parent=11 // pred_check_branch
          %311 = sbr.rel (%p309) target = $region24
        $region23: #{tpu_custom_call.1} parent=11 // pred_region
          %313 = vsyncadd [#allocation10], 0
          %s314 = sshll.u32 %s4, 4
          %s315 = int_to_ptr.hbm [resolvable:$true] %s314
          %s316 = sshll.u32 [#allocation9], 4
          %s317 = int_to_ptr.vmem [resolvable:$true] %s316
          %322 = dma.hbm_to_vmem [thread:$0]  %s315, 2048, %s317, [#allocation10], 128, 128, 8
        $region24: #{tpu_custom_call.1} parent=11 // pred_fallthru
          _
        // Predicated region
        $region25: #{tpu_custom_call.1} parent=11 // pred_check
          %p323 = pneg %p172
        $region26: #{tpu_custom_call.1} parent=11 // pred_check_branch
          %325 = sbr.rel (%p323) target = $region28
        $region27: #{tpu_custom_call.1} parent=11 // pred_region
          _
        $region28: #{tpu_custom_call.1} parent=11 // pred_fallthru
          _
        // Predicated region
        $region29: #{tpu_custom_call.1} parent=11 // pred_check
          %p326 = pneg %p193
        $region30: #{tpu_custom_call.1} parent=11 // pred_check_branch
          %328 = sbr.rel (%p326) target = $region32
        $region31: #{tpu_custom_call.1} parent=11 // pred_region
          %330 = vsyncadd [#allocation10], 0
          %s331 = sshll.u32 %s6, 4
          %s332 = int_to_ptr.hbm [resolvable:$true] %s331
          %s333 = sshll.u32 [#allocation11], 4
          %s334 = int_to_ptr.vmem [resolvable:$true] %s333
          %339 = dma.hbm_to_vmem [thread:$0]  %s332, 2048, %s334, [#allocation10], 128, 128, 8
        $region32: #{tpu_custom_call.1} parent=11 // pred_fallthru
          _
        // Predicated region
        $region33: #{tpu_custom_call.1} parent=11 // pred_check
          %p340 = pneg %p214
        $region34: #{tpu_custom_call.1} parent=11 // pred_check_branch
          %342 = sbr.rel (%p340) target = $region36
        $region35: #{tpu_custom_call.1} parent=11 // pred_region
          _
        $region36: #{tpu_custom_call.1} parent=11 // pred_fallthru
          _
        // Predicated region
        $region37: #{tpu_custom_call.1} parent=11 // pred_check
          %p343 = pneg %p235
        $region38: #{tpu_custom_call.1} parent=11 // pred_check_branch
          %345 = sbr.rel (%p343) target = $region40
        $region39: #{tpu_custom_call.1} parent=11 // pred_region
          _
        $region40: #{tpu_custom_call.1} parent=11 // pred_fallthru
          _
      $region12: #{tpu_custom_call.1} parent=5 // pred_fallthru
        _
      %p346 = scmp.lt.s32.totalorder %s26, 2
      // Predicated region
      $region41: #{tpu_custom_call.1} parent=5 // pred_check
        %p347 = pneg %p346
      $region42: #{tpu_custom_call.1} parent=5 // pred_check_branch
        %349 = sbr.rel (%p347) target = $region44
      $region43: #{tpu_custom_call.1} parent=5 // pred_region
        // Predicated region
        $region45: #{tpu_custom_call.1} parent=43 // pred_check
          %p350 = pneg %p50
        $region46: #{tpu_custom_call.1} parent=43 // pred_check_branch
          %352 = sbr.rel (%p350) target = $region48
        $region47: #{tpu_custom_call.1} parent=43 // pred_region
          %s353 = sand.u32 %s40, 1
          %s354 = scalar_lea.sflag [#allocation4], %s353
          %s355 = sand.u32 %s40, 1
          %s356 = smul.addr %s355, 128
          %s357 = scalar_lea.vmem [#allocation3], %s356
          %p358 = scmp.lt.s32.totalorder %s26, 0
          %s359 = scalar_select %p358, %s26, 0
          %s360 = smul.u32 2, %s359
          %362 = vsyncadd %s354, 0
          %s363 = smul.addr %s360, 8
          %s364 = smul.addr %s363, 8
          %s365 = scalar_lea.hbm %s0, %s364
          %s366 = sshll.u32 %s365, 4
          %s367 = int_to_ptr.hbm [resolvable:$true] %s366
          %s368 = sshll.u32 %s357, 4
          %s369 = int_to_ptr.vmem [resolvable:$true] %s368
          %374 = dma.hbm_to_vmem [thread:$0]  %s367, 2048, %s369, %s354, 1024, 1024, 64
        $region48: #{tpu_custom_call.1} parent=43 // pred_fallthru
          _
        // Predicated region
        $region49: #{tpu_custom_call.1} parent=43 // pred_check
          %p375 = pneg %p82
        $region50: #{tpu_custom_call.1} parent=43 // pred_check_branch
          %377 = sbr.rel (%p375) target = $region52
        $region51: #{tpu_custom_call.1} parent=43 // pred_region
          %s378 = sand.u32 %s26, 1
          %s379 = scalar_lea.sflag [#allocation7], %s378
          %s380 = sand.u32 %s72, 1
          %s381 = smul.addr %s380, 128
          %s382 = scalar_lea.vmem [#allocation6], %s381
          %s383 = ssub.s32 %s26, 1
          %p384 = scmp.gt.s32.totalorder %s383, 0
          %s385 = scalar_select %p384, %s383, 0
          %s386 = smul.u32 2, %s385
          %388 = vsyncadd %s379, 0
          %s389 = smul.addr %s386, 8
          %s390 = smul.addr %s389, 8
          %s391 = scalar_lea.hbm %s1, %s390
          %s392 = sshll.u32 %s391, 4
          %s393 = int_to_ptr.hbm [resolvable:$true] %s392
          %s394 = sshll.u32 %s382, 4
          %s395 = int_to_ptr.vmem [resolvable:$true] %s394
          %400 = dma.hbm_to_vmem [thread:$0]  %s393, 2048, %s395, %s379, 1024, 1024, 64
        $region52: #{tpu_custom_call.1} parent=43 // pred_fallthru
          _
      $region44: #{tpu_custom_call.1} parent=5 // pred_fallthru
        _
      %p401 = scmp.le.s32.totalorder 1, %s26
      %p402 = scmp.lt.s32.totalorder %s26, 3
      %p403 = pnand %p401, %p402
      %p404 = pneg %p403
      // Predicated region
      $region53: #{tpu_custom_call.1} parent=5 // pred_check
        _
      $region54: #{tpu_custom_call.1} parent=5 // pred_check_branch
        %406 = sbr.rel (%p403) target = $region56
      $region55: #{tpu_custom_call.1} parent=5 // pred_region
        %s407 = ssub.s32 %s26, 1
        %s408 = sand.u32 %s43, 1
        %s409 = scalar_lea.sflag [#allocation4], %s408
        %s410 = sand.u32 %s43, 1
        %s411 = smul.addr %s410, 128
        %s412 = scalar_lea.vmem [#allocation3], %s411
        // Predicated region
        $region57: #{tpu_custom_call.1} parent=55 // pred_check
          %p413 = pneg %p56
        $region58: #{tpu_custom_call.1} parent=55 // pred_check_branch
          %415 = sbr.rel (%p413) target = $region60
        $region59: #{tpu_custom_call.1} parent=55 // pred_region
          %417 = dma.done %s409, 2048
        $region60: #{tpu_custom_call.1} parent=55 // pred_fallthru
          _
        %s418 = sand.u32 %s31, 1
        %s419 = scalar_lea.sflag [#allocation7], %s418
        %s420 = sand.u32 %s75, 1
        %s421 = smul.addr %s420, 128
        %s422 = scalar_lea.vmem [#allocation6], %s421
        // Predicated region
        $region61: #{tpu_custom_call.1} parent=55 // pred_check
          %p423 = pneg %p88
        $region62: #{tpu_custom_call.1} parent=55 // pred_check_branch
          %425 = sbr.rel (%p423) target = $region64
        $region63: #{tpu_custom_call.1} parent=55 // pred_region
          %427 = dma.done %s419, 2048
        $region64: #{tpu_custom_call.1} parent=55 // pred_fallthru
          _
        // Predicated region
        $region65: #{tpu_custom_call.1} parent=55 // pred_check
          %p428 = pneg %p109
        $region66: #{tpu_custom_call.1} parent=55 // pred_check_branch
          %430 = sbr.rel (%p428) target = $region68
        $region67: #{tpu_custom_call.1} parent=55 // pred_region
          %432 = dma.done [#allocation7], 16384
        $region68: #{tpu_custom_call.1} parent=55 // pred_fallthru
          _
        // Predicated region
        $region69: #{tpu_custom_call.1} parent=55 // pred_check
          %p433 = pneg %p151
        $region70: #{tpu_custom_call.1} parent=55 // pred_check_branch
          %435 = sbr.rel (%p433) target = $region72
        $region71: #{tpu_custom_call.1} parent=55 // pred_region
          %437 = dma.done [#allocation10], 2048
        $region72: #{tpu_custom_call.1} parent=55 // pred_fallthru
          _
        // Predicated region
        $region73: #{tpu_custom_call.1} parent=55 // pred_check
          %p438 = pneg %p193
        $region74: #{tpu_custom_call.1} parent=55 // pred_check_branch
          %440 = sbr.rel (%p438) target = $region76
        $region75: #{tpu_custom_call.1} parent=55 // pred_region
          %442 = dma.done [#allocation10], 2048
        $region76: #{tpu_custom_call.1} parent=55 // pred_fallthru
          _
        %s443 = sand.u32 %s43, 1
        %s444 = scalar_lea.sflag [#allocation4], %s443
        %s445 = sand.u32 %s43, 1
        %s446 = smul.addr %s445, 128
        %s447 = scalar_lea.vmem [#allocation3], %s446
        %p448 = pneg %p56
        %p449 = pneg %p53
        %s450 = sand.u32 %s31, 1
        %s451 = scalar_lea.sflag [#allocation7], %s450
        %s452 = sand.u32 %s75, 1
        %s453 = smul.addr %s452, 128
        %s454 = scalar_lea.vmem [#allocation6], %s453
        %p455 = pneg %p88
        %p456 = pneg %p85
        %p457 = pneg %p109
        %p458 = pneg %p106
        %p459 = pneg %p130
        %p460 = pneg %p127
        %p461 = pneg %p151
        %p462 = pneg %p148
        %p463 = pneg %p172
        %p464 = pneg %p169
        %p465 = pneg %p193
        %p466 = pneg %p190
        %p467 = pneg %p214
        %p468 = pneg %p211
        %p469 = pneg %p235
        %p470 = pneg %p232
        %p471 = pneg %p256
        %p472 = pneg %p253
        %p473 = pneg %p277
        %p474 = pneg %p274
        %p475 = scmp.lt.s32.totalorder %s31, 0
        %s476 = scalar_select %p475, %s31, 0
        %s477 = smul.u32 2, %s476
        %s478 = ssub.s32 %s31, 1
        %p479 = scmp.gt.s32.totalorder %s478, 0
        %s480 = scalar_select %p479, %s478, 0
        %s481 = smul.u32 2, %s480
        %s482 = smul.u32 %s31, 16
        %p483 = scmp.lt.s32.totalorder %s31, 1
        // Predicated region
        $region77: #{tpu_custom_call.1} parent=55 // pred_check
          %p484 = pneg %p483
        $region78: #{tpu_custom_call.1} parent=55 // pred_check_branch
          %486 = sbr.rel (%p484) target = $region80
        $region79: #{tpu_custom_call.1} parent=55 // pred_region
          %v487 = vld [vmem:[%s412] sm:$0xff]
          %v488 = vld [vmem:[%s412 + $0x8] sm:$0xff]
          %v489 = vld [vmem:[%s412 + $0x10] sm:$0xff]
          %v490 = vld [vmem:[%s412 + $0x18] sm:$0xff]
          %v491 = vld [vmem:[%s412 + $0x20] sm:$0xff]
          %v492 = vld [vmem:[%s412 + $0x28] sm:$0xff]
          %v493 = vld [vmem:[%s412 + $0x30] sm:$0xff]
          %v494 = vld [vmem:[%s412 + $0x38] sm:$0xff]
          %v495 = vld [vmem:[%s412 + $0x40] sm:$0xff]
          %v496 = vld [vmem:[%s412 + $0x48] sm:$0xff]
          %v497 = vld [vmem:[%s412 + $0x50] sm:$0xff]
          %v498 = vld [vmem:[%s412 + $0x58] sm:$0xff]
          %v499 = vld [vmem:[%s412 + $0x60] sm:$0xff]
          %v500 = vld [vmem:[%s412 + $0x68] sm:$0xff]
          %v501 = vld [vmem:[%s412 + $0x70] sm:$0xff]
          %v502 = vld [vmem:[%s412 + $0x78] sm:$0xff]
          %v503 = vld [vmem:[#allocation8] sm:$0xff]
          %v504 = vld [vmem:[#allocation8 + $0x8] sm:$0xff]
          %v505 = vld [vmem:[#allocation8 + $0x10] sm:$0xff]
          %v506 = vld [vmem:[#allocation8 + $0x18] sm:$0xff]
          %v507 = vld [vmem:[#allocation8 + $0x20] sm:$0xff]
          %v508 = vld [vmem:[#allocation8 + $0x28] sm:$0xff]
          %v509 = vld [vmem:[#allocation8 + $0x30] sm:$0xff]
          %v510 = vld [vmem:[#allocation8 + $0x38] sm:$0xff]
          %v511 = vld [vmem:[#allocation8 + $0x40] sm:$0xff]
          %v512 = vld [vmem:[#allocation8 + $0x48] sm:$0xff]
          %v513 = vld [vmem:[#allocation8 + $0x50] sm:$0xff]
          %v514 = vld [vmem:[#allocation8 + $0x58] sm:$0xff]
          %v515 = vld [vmem:[#allocation8 + $0x60] sm:$0xff]
          %v516 = vld [vmem:[#allocation8 + $0x68] sm:$0xff]
          %v517 = vld [vmem:[#allocation8 + $0x70] sm:$0xff]
          %v518 = vld [vmem:[#allocation8 + $0x78] sm:$0xff]
          %v519 = vld [vmem:[#allocation8 + $0x80] sm:$0xff]
          %v520 = vld [vmem:[#allocation8 + $0x88] sm:$0xff]
          %v521 = vld [vmem:[#allocation8 + $0x90] sm:$0xff]
          %v522 = vld [vmem:[#allocation8 + $0x98] sm:$0xff]
          %v523 = vld [vmem:[#allocation8 + $0xa0] sm:$0xff]
          %v524 = vld [vmem:[#allocation8 + $0xa8] sm:$0xff]
          %v525 = vld [vmem:[#allocation8 + $0xb0] sm:$0xff]
          %v526 = vld [vmem:[#allocation8 + $0xb8] sm:$0xff]
          %v527 = vld [vmem:[#allocation8 + $0xc0] sm:$0xff]
          %v528 = vld [vmem:[#allocation8 + $0xc8] sm:$0xff]
          %v529 = vld [vmem:[#allocation8 + $0xd0] sm:$0xff]
          %v530 = vld [vmem:[#allocation8 + $0xd8] sm:$0xff]
          %v531 = vld [vmem:[#allocation8 + $0xe0] sm:$0xff]
          %v532 = vld [vmem:[#allocation8 + $0xe8] sm:$0xff]
          %v533 = vld [vmem:[#allocation8 + $0xf0] sm:$0xff]
          %v534 = vld [vmem:[#allocation8 + $0xf8] sm:$0xff]
          %v535 = vld [vmem:[#allocation8 + $0x100] sm:$0xff]
          %v536 = vld [vmem:[#allocation8 + $0x108] sm:$0xff]
          %v537 = vld [vmem:[#allocation8 + $0x110] sm:$0xff]
          %v538 = vld [vmem:[#allocation8 + $0x118] sm:$0xff]
          %v539 = vld [vmem:[#allocation8 + $0x120] sm:$0xff]
          %v540 = vld [vmem:[#allocation8 + $0x128] sm:$0xff]
          %v541 = vld [vmem:[#allocation8 + $0x130] sm:$0xff]
          %v542 = vld [vmem:[#allocation8 + $0x138] sm:$0xff]
          %v543 = vld [vmem:[#allocation8 + $0x140] sm:$0xff]
          %v544 = vld [vmem:[#allocation8 + $0x148] sm:$0xff]
          %v545 = vld [vmem:[#allocation8 + $0x150] sm:$0xff]
          %v546 = vld [vmem:[#allocation8 + $0x158] sm:$0xff]
          %v547 = vld [vmem:[#allocation8 + $0x160] sm:$0xff]
          %v548 = vld [vmem:[#allocation8 + $0x168] sm:$0xff]
          %v549 = vld [vmem:[#allocation8 + $0x170] sm:$0xff]
          %v550 = vld [vmem:[#allocation8 + $0x178] sm:$0xff]
          %v551 = vld [vmem:[#allocation8 + $0x180] sm:$0xff]
          %v552 = vld [vmem:[#allocation8 + $0x188] sm:$0xff]
          %v553 = vld [vmem:[#allocation8 + $0x190] sm:$0xff]
          %v554 = vld [vmem:[#allocation8 + $0x198] sm:$0xff]
          %v555 = vld [vmem:[#allocation8 + $0x1a0] sm:$0xff]
          %v556 = vld [vmem:[#allocation8 + $0x1a8] sm:$0xff]
          %v557 = vld [vmem:[#allocation8 + $0x1b0] sm:$0xff]
          %v558 = vld [vmem:[#allocation8 + $0x1b8] sm:$0xff]
          %v559 = vld [vmem:[#allocation8 + $0x1c0] sm:$0xff]
          %v560 = vld [vmem:[#allocation8 + $0x1c8] sm:$0xff]
          %v561 = vld [vmem:[#allocation8 + $0x1d0] sm:$0xff]
          %v562 = vld [vmem:[#allocation8 + $0x1d8] sm:$0xff]
          %v563 = vld [vmem:[#allocation8 + $0x1e0] sm:$0xff]
          %v564 = vld [vmem:[#allocation8 + $0x1e8] sm:$0xff]
          %v565 = vld [vmem:[#allocation8 + $0x1f0] sm:$0xff]
          %v566 = vld [vmem:[#allocation8 + $0x1f8] sm:$0xff]
          %v567 = vld [vmem:[#allocation8 + $0x200] sm:$0xff]
          %v568 = vld [vmem:[#allocation8 + $0x208] sm:$0xff]
          %v569 = vld [vmem:[#allocation8 + $0x210] sm:$0xff]
          %v570 = vld [vmem:[#allocation8 + $0x218] sm:$0xff]
          %v571 = vld [vmem:[#allocation8 + $0x220] sm:$0xff]
          %v572 = vld [vmem:[#allocation8 + $0x228] sm:$0xff]
          %v573 = vld [vmem:[#allocation8 + $0x230] sm:$0xff]
          %v574 = vld [vmem:[#allocation8 + $0x238] sm:$0xff]
          %v575 = vld [vmem:[#allocation8 + $0x240] sm:$0xff]
          %v576 = vld [vmem:[#allocation8 + $0x248] sm:$0xff]
          %v577 = vld [vmem:[#allocation8 + $0x250] sm:$0xff]
          %v578 = vld [vmem:[#allocation8 + $0x258] sm:$0xff]
          %v579 = vld [vmem:[#allocation8 + $0x260] sm:$0xff]
          %v580 = vld [vmem:[#allocation8 + $0x268] sm:$0xff]
          %v581 = vld [vmem:[#allocation8 + $0x270] sm:$0xff]
          %v582 = vld [vmem:[#allocation8 + $0x278] sm:$0xff]
          %v583 = vld [vmem:[#allocation8 + $0x280] sm:$0xff]
          %v584 = vld [vmem:[#allocation8 + $0x288] sm:$0xff]
          %v585 = vld [vmem:[#allocation8 + $0x290] sm:$0xff]
          %v586 = vld [vmem:[#allocation8 + $0x298] sm:$0xff]
          %v587 = vld [vmem:[#allocation8 + $0x2a0] sm:$0xff]
          %v588 = vld [vmem:[#allocation8 + $0x2a8] sm:$0xff]
          %v589 = vld [vmem:[#allocation8 + $0x2b0] sm:$0xff]
          %v590 = vld [vmem:[#allocation8 + $0x2b8] sm:$0xff]
          %v591 = vld [vmem:[#allocation8 + $0x2c0] sm:$0xff]
          %v592 = vld [vmem:[#allocation8 + $0x2c8] sm:$0xff]
          %v593 = vld [vmem:[#allocation8 + $0x2d0] sm:$0xff]
          %v594 = vld [vmem:[#allocation8 + $0x2d8] sm:$0xff]
          %v595 = vld [vmem:[#allocation8 + $0x2e0] sm:$0xff]
          %v596 = vld [vmem:[#allocation8 + $0x2e8] sm:$0xff]
          %v597 = vld [vmem:[#allocation8 + $0x2f0] sm:$0xff]
          %v598 = vld [vmem:[#allocation8 + $0x2f8] sm:$0xff]
          %v599 = vld [vmem:[#allocation8 + $0x300] sm:$0xff]
          %v600 = vld [vmem:[#allocation8 + $0x308] sm:$0xff]
          %v601 = vld [vmem:[#allocation8 + $0x310] sm:$0xff]
          %v602 = vld [vmem:[#allocation8 + $0x318] sm:$0xff]
          %v603 = vld [vmem:[#allocation8 + $0x320] sm:$0xff]
          %v604 = vld [vmem:[#allocation8 + $0x328] sm:$0xff]
          %v605 = vld [vmem:[#allocation8 + $0x330] sm:$0xff]
          %v606 = vld [vmem:[#allocation8 + $0x338] sm:$0xff]
          %v607 = vld [vmem:[#allocation8 + $0x340] sm:$0xff]
          %v608 = vld [vmem:[#allocation8 + $0x348] sm:$0xff]
          %v609 = vld [vmem:[#allocation8 + $0x350] sm:$0xff]
          %v610 = vld [vmem:[#allocation8 + $0x358] sm:$0xff]
          %v611 = vld [vmem:[#allocation8 + $0x360] sm:$0xff]
          %v612 = vld [vmem:[#allocation8 + $0x368] sm:$0xff]
          %v613 = vld [vmem:[#allocation8 + $0x370] sm:$0xff]
          %v614 = vld [vmem:[#allocation8 + $0x378] sm:$0xff]
          %v615 = vld [vmem:[#allocation8 + $0x380] sm:$0xff]
          %v616 = vld [vmem:[#allocation8 + $0x388] sm:$0xff]
          %v617 = vld [vmem:[#allocation8 + $0x390] sm:$0xff]
          %v618 = vld [vmem:[#allocation8 + $0x398] sm:$0xff]
          %v619 = vld [vmem:[#allocation8 + $0x3a0] sm:$0xff]
          %v620 = vld [vmem:[#allocation8 + $0x3a8] sm:$0xff]
          %v621 = vld [vmem:[#allocation8 + $0x3b0] sm:$0xff]
          %v622 = vld [vmem:[#allocation8 + $0x3b8] sm:$0xff]
          %v623 = vld [vmem:[#allocation8 + $0x3c0] sm:$0xff]
          %v624 = vld [vmem:[#allocation8 + $0x3c8] sm:$0xff]
          %v625 = vld [vmem:[#allocation8 + $0x3d0] sm:$0xff]
          %v626 = vld [vmem:[#allocation8 + $0x3d8] sm:$0xff]
          %v627 = vld [vmem:[#allocation8 + $0x3e0] sm:$0xff]
          %v628 = vld [vmem:[#allocation8 + $0x3e8] sm:$0xff]
          %v629 = vld [vmem:[#allocation8 + $0x3f0] sm:$0xff]
          %v630 = vld [vmem:[#allocation8 + $0x3f8] sm:$0xff]
          %v631 = vld [vmem:[%s3] sm:$0x1]
          %v632 = vld [vmem:[#allocation9] sm:$0xff]
          %v633 = vld [vmem:[#allocation9 + $0x8] sm:$0xff]
          %v634 = vld [vmem:[#allocation9 + $0x10] sm:$0xff]
          %v635 = vld [vmem:[#allocation9 + $0x18] sm:$0xff]
          %v636 = vld [vmem:[#allocation9 + $0x20] sm:$0xff]
          %v637 = vld [vmem:[#allocation9 + $0x28] sm:$0xff]
          %v638 = vld [vmem:[#allocation9 + $0x30] sm:$0xff]
          %v639 = vld [vmem:[#allocation9 + $0x38] sm:$0xff]
          %v640 = vld [vmem:[#allocation9 + $0x40] sm:$0xff]
          %v641 = vld [vmem:[#allocation9 + $0x48] sm:$0xff]
          %v642 = vld [vmem:[#allocation9 + $0x50] sm:$0xff]
          %v643 = vld [vmem:[#allocation9 + $0x58] sm:$0xff]
          %v644 = vld [vmem:[#allocation9 + $0x60] sm:$0xff]
          %v645 = vld [vmem:[#allocation9 + $0x68] sm:$0xff]
          %v646 = vld [vmem:[#allocation9 + $0x70] sm:$0xff]
          %v647 = vld [vmem:[#allocation9 + $0x78] sm:$0xff]
          %v648 = vld [vmem:[%s5] sm:$0x1]
          %v649 = vld [vmem:[#allocation11] sm:$0xff]
          %v650 = vld [vmem:[#allocation11 + $0x8] sm:$0xff]
          %v651 = vld [vmem:[#allocation11 + $0x10] sm:$0xff]
          %v652 = vld [vmem:[#allocation11 + $0x18] sm:$0xff]
          %v653 = vld [vmem:[#allocation11 + $0x20] sm:$0xff]
          %v654 = vld [vmem:[#allocation11 + $0x28] sm:$0xff]
          %v655 = vld [vmem:[#allocation11 + $0x30] sm:$0xff]
          %v656 = vld [vmem:[#allocation11 + $0x38] sm:$0xff]
          %v657 = vld [vmem:[#allocation11 + $0x40] sm:$0xff]
          %v658 = vld [vmem:[#allocation11 + $0x48] sm:$0xff]
          %v659 = vld [vmem:[#allocation11 + $0x50] sm:$0xff]
          %v660 = vld [vmem:[#allocation11 + $0x58] sm:$0xff]
          %v661 = vld [vmem:[#allocation11 + $0x60] sm:$0xff]
          %v662 = vld [vmem:[#allocation11 + $0x68] sm:$0xff]
          %v663 = vld [vmem:[#allocation11 + $0x70] sm:$0xff]
          %v664 = vld [vmem:[#allocation11 + $0x78] sm:$0xff]
          %v665 = vld [vmem:[%s7] sm:$0x1]
          %v667 = vperm.slane %v631, 0
          %669 = vmatpush.msra.mxu0 %v518
          %670 = vmatpush.msra.mxu0 %v517
          %671 = vmatpush.msra.mxu0 %v516
          %672 = vmatpush.msra.mxu0 %v515
          %673 = vmatpush.msra.mxu0 %v514
          %674 = vmatpush.msra.mxu0 %v513
          %675 = vmatpush.msra.mxu0 %v512
          %676 = vmatpush.msra.mxu0 %v511
          %677 = vmatpush.msra.mxu0 %v510
          %678 = vmatpush.msra.mxu0 %v509
          %679 = vmatpush.msra.mxu0 %v508
          %680 = vmatpush.msra.mxu0 %v507
          %681 = vmatpush.msra.mxu0 %v506
          %682 = vmatpush.msra.mxu0 %v505
          %683 = vmatpush.msra.mxu0 %v504
          %684 = vmatpush.msra.mxu0 %v503
          %685 = vmatmul.f32.gmra.mxu0 %v487
          %v686 = vpop.f32.mrf.mxu0
          %v687 = vadd.f32 %v667, %v686
          %688 = vmatmul.f32.gmra.mxu0 %v495
          %v689 = vpop.f32.mrf.mxu0
          %v690 = vadd.f32 %v667, %v689
          %691 = vdwg.mxu0
          %692 = vmatpush.msra.mxu0 %v534
          %693 = vmatpush.msra.mxu0 %v533
          %694 = vmatpush.msra.mxu0 %v532
          %695 = vmatpush.msra.mxu0 %v531
          %696 = vmatpush.msra.mxu0 %v530
          %697 = vmatpush.msra.mxu0 %v529
          %698 = vmatpush.msra.mxu0 %v528
          %699 = vmatpush.msra.mxu0 %v527
          %700 = vmatpush.msra.mxu0 %v526
          %701 = vmatpush.msra.mxu0 %v525
          %702 = vmatpush.msra.mxu0 %v524
          %703 = vmatpush.msra.mxu0 %v523
          %704 = vmatpush.msra.mxu0 %v522
          %705 = vmatpush.msra.mxu0 %v521
          %706 = vmatpush.msra.mxu0 %v520
          %707 = vmatpush.msra.mxu0 %v519
          %708 = vmatmul.f32.gmra.mxu0 %v488
          %v709 = vpop.f32.mrf.mxu0
          %v710 = vadd.f32 %v687, %v709
          %711 = vmatmul.f32.gmra.mxu0 %v496
          %v712 = vpop.f32.mrf.mxu0
          %v713 = vadd.f32 %v690, %v712
          %714 = vdwg.mxu0
          %715 = vmatpush.msra.mxu0 %v550
          %716 = vmatpush.msra.mxu0 %v549
          %717 = vmatpush.msra.mxu0 %v548
          %718 = vmatpush.msra.mxu0 %v547
          %719 = vmatpush.msra.mxu0 %v546
          %720 = vmatpush.msra.mxu0 %v545
          %721 = vmatpush.msra.mxu0 %v544
          %722 = vmatpush.msra.mxu0 %v543
          %723 = vmatpush.msra.mxu0 %v542
          %724 = vmatpush.msra.mxu0 %v541
          %725 = vmatpush.msra.mxu0 %v540
          %726 = vmatpush.msra.mxu0 %v539
          %727 = vmatpush.msra.mxu0 %v538
          %728 = vmatpush.msra.mxu0 %v537
          %729 = vmatpush.msra.mxu0 %v536
          %730 = vmatpush.msra.mxu0 %v535
          %731 = vmatmul.f32.gmra.mxu0 %v489
          %v732 = vpop.f32.mrf.mxu0
          %v733 = vadd.f32 %v710, %v732
          %734 = vmatmul.f32.gmra.mxu0 %v497
          %v735 = vpop.f32.mrf.mxu0
          %v736 = vadd.f32 %v713, %v735
          %737 = vdwg.mxu0
          %738 = vmatpush.msra.mxu0 %v566
          %739 = vmatpush.msra.mxu0 %v565
          %740 = vmatpush.msra.mxu0 %v564
          %741 = vmatpush.msra.mxu0 %v563
          %742 = vmatpush.msra.mxu0 %v562
          %743 = vmatpush.msra.mxu0 %v561
          %744 = vmatpush.msra.mxu0 %v560
          %745 = vmatpush.msra.mxu0 %v559
          %746 = vmatpush.msra.mxu0 %v558
          %747 = vmatpush.msra.mxu0 %v557
          %748 = vmatpush.msra.mxu0 %v556
          %749 = vmatpush.msra.mxu0 %v555
          %750 = vmatpush.msra.mxu0 %v554
          %751 = vmatpush.msra.mxu0 %v553
          %752 = vmatpush.msra.mxu0 %v552
          %753 = vmatpush.msra.mxu0 %v551
          %754 = vmatmul.f32.gmra.mxu0 %v490
          %v755 = vpop.f32.mrf.mxu0
          %v756 = vadd.f32 %v733, %v755
          %757 = vmatmul.f32.gmra.mxu0 %v498
          %v758 = vpop.f32.mrf.mxu0
          %v759 = vadd.f32 %v736, %v758
          %760 = vdwg.mxu0
          %761 = vmatpush.msra.mxu0 %v582
          %762 = vmatpush.msra.mxu0 %v581
          %763 = vmatpush.msra.mxu0 %v580
          %764 = vmatpush.msra.mxu0 %v579
          %765 = vmatpush.msra.mxu0 %v578
          %766 = vmatpush.msra.mxu0 %v577
          %767 = vmatpush.msra.mxu0 %v576
          %768 = vmatpush.msra.mxu0 %v575
          %769 = vmatpush.msra.mxu0 %v574
          %770 = vmatpush.msra.mxu0 %v573
          %771 = vmatpush.msra.mxu0 %v572
          %772 = vmatpush.msra.mxu0 %v571
          %773 = vmatpush.msra.mxu0 %v570
          %774 = vmatpush.msra.mxu0 %v569
          %775 = vmatpush.msra.mxu0 %v568
          %776 = vmatpush.msra.mxu0 %v567
          %777 = vmatmul.f32.gmra.mxu0 %v491
          %v778 = vpop.f32.mrf.mxu0
          %v779 = vadd.f32 %v756, %v778
          %780 = vmatmul.f32.gmra.mxu0 %v499
          %v781 = vpop.f32.mrf.mxu0
          %v782 = vadd.f32 %v759, %v781
          %783 = vdwg.mxu0
          %784 = vmatpush.msra.mxu0 %v598
          %785 = vmatpush.msra.mxu0 %v597
          %786 = vmatpush.msra.mxu0 %v596
          %787 = vmatpush.msra.mxu0 %v595
          %788 = vmatpush.msra.mxu0 %v594
          %789 = vmatpush.msra.mxu0 %v593
          %790 = vmatpush.msra.mxu0 %v592
          %791 = vmatpush.msra.mxu0 %v591
          %792 = vmatpush.msra.mxu0 %v590
          %793 = vmatpush.msra.mxu0 %v589
          %794 = vmatpush.msra.mxu0 %v588
          %795 = vmatpush.msra.mxu0 %v587
          %796 = vmatpush.msra.mxu0 %v586
          %797 = vmatpush.msra.mxu0 %v585
          %798 = vmatpush.msra.mxu0 %v584
          %799 = vmatpush.msra.mxu0 %v583
          %800 = vmatmul.f32.gmra.mxu0 %v492
          %v801 = vpop.f32.mrf.mxu0
          %v802 = vadd.f32 %v779, %v801
          %803 = vmatmul.f32.gmra.mxu0 %v500
          %v804 = vpop.f32.mrf.mxu0
          %v805 = vadd.f32 %v782, %v804
          %806 = vdwg.mxu0
          %807 = vmatpush.msra.mxu0 %v614
          %808 = vmatpush.msra.mxu0 %v613
          %809 = vmatpush.msra.mxu0 %v612
          %810 = vmatpush.msra.mxu0 %v611
          %811 = vmatpush.msra.mxu0 %v610
          %812 = vmatpush.msra.mxu0 %v609
          %813 = vmatpush.msra.mxu0 %v608
          %814 = vmatpush.msra.mxu0 %v607
          %815 = vmatpush.msra.mxu0 %v606
          %816 = vmatpush.msra.mxu0 %v605
          %817 = vmatpush.msra.mxu0 %v604
          %818 = vmatpush.msra.mxu0 %v603
          %819 = vmatpush.msra.mxu0 %v602
          %820 = vmatpush.msra.mxu0 %v601
          %821 = vmatpush.msra.mxu0 %v600
          %822 = vmatpush.msra.mxu0 %v599
          %823 = vmatmul.f32.gmra.mxu0 %v493
          %v824 = vpop.f32.mrf.mxu0
          %v825 = vadd.f32 %v802, %v824
          %826 = vmatmul.f32.gmra.mxu0 %v501
          %v827 = vpop.f32.mrf.mxu0
          %v828 = vadd.f32 %v805, %v827
          %829 = vdwg.mxu0
          %830 = vmatpush.msra.mxu0 %v630
          %831 = vmatpush.msra.mxu0 %v629
          %832 = vmatpush.msra.mxu0 %v628
          %833 = vmatpush.msra.mxu0 %v627
          %834 = vmatpush.msra.mxu0 %v626
          %835 = vmatpush.msra.mxu0 %v625
          %836 = vmatpush.msra.mxu0 %v624
          %837 = vmatpush.msra.mxu0 %v623
          %838 = vmatpush.msra.mxu0 %v622
          %839 = vmatpush.msra.mxu0 %v621
          %840 = vmatpush.msra.mxu0 %v620
          %841 = vmatpush.msra.mxu0 %v619
          %842 = vmatpush.msra.mxu0 %v618
          %843 = vmatpush.msra.mxu0 %v617
          %844 = vmatpush.msra.mxu0 %v616
          %845 = vmatpush.msra.mxu0 %v615
          %846 = vmatmul.f32.gmra.mxu0 %v494
          %v847 = vpop.f32.mrf.mxu0
          %v848 = vadd.f32 %v825, %v847
          %849 = vmatmul.f32.gmra.mxu0 %v502
          %v850 = vpop.f32.mrf.mxu0
          %v851 = vadd.f32 %v828, %v850
          %852 = vdwg.mxu0
          %v853 = vmax.f32 %v848, 0.0
          %v854 = vmax.f32 %v851, 0.0
          %v856 = vperm.slane %v648, 0
          %858 = vmatpush.msra.mxu0 %v647
          %859 = vmatpush.msra.mxu0 %v646
          %860 = vmatpush.msra.mxu0 %v645
          %861 = vmatpush.msra.mxu0 %v644
          %862 = vmatpush.msra.mxu0 %v643
          %863 = vmatpush.msra.mxu0 %v642
          %864 = vmatpush.msra.mxu0 %v641
          %865 = vmatpush.msra.mxu0 %v640
          %866 = vmatpush.msra.mxu0 %v639
          %867 = vmatpush.msra.mxu0 %v638
          %868 = vmatpush.msra.mxu0 %v637
          %869 = vmatpush.msra.mxu0 %v636
          %870 = vmatpush.msra.mxu0 %v635
          %871 = vmatpush.msra.mxu0 %v634
          %872 = vmatpush.msra.mxu0 %v633
          %873 = vmatpush.msra.mxu0 %v632
          %874 = vmatmul.f32.gmra.mxu0 %v853
          %v875 = vpop.f32.mrf.mxu0
          %v876 = vadd.f32 %v856, %v875
          %877 = vmatmul.f32.gmra.mxu0 %v854
          %v878 = vpop.f32.mrf.mxu0
          %v879 = vadd.f32 %v856, %v878
          %880 = vdwg.mxu0
          %v881 = vmax.f32 %v876, 0.0
          %v882 = vmax.f32 %v879, 0.0
          %v884 = vperm.slane %v665, 0
          %886 = vmatpush.msra.mxu0 %v664
          %887 = vmatpush.msra.mxu0 %v663
          %888 = vmatpush.msra.mxu0 %v662
          %889 = vmatpush.msra.mxu0 %v661
          %890 = vmatpush.msra.mxu0 %v660
          %891 = vmatpush.msra.mxu0 %v659
          %892 = vmatpush.msra.mxu0 %v658
          %893 = vmatpush.msra.mxu0 %v657
          %894 = vmatpush.msra.mxu0 %v656
          %895 = vmatpush.msra.mxu0 %v655
          %896 = vmatpush.msra.mxu0 %v654
          %897 = vmatpush.msra.mxu0 %v653
          %898 = vmatpush.msra.mxu0 %v652
          %899 = vmatpush.msra.mxu0 %v651
          %900 = vmatpush.msra.mxu0 %v650
          %901 = vmatpush.msra.mxu0 %v649
          %902 = vmatmul.f32.gmra.mxu0 %v881
          %v903 = vpop.f32.mrf.mxu0
          %v904 = vadd.f32 %v884, %v903
          %905 = vmatmul.f32.gmra.mxu0 %v882
          %v906 = vpop.f32.mrf.mxu0
          %v907 = vadd.f32 %v884, %v906
          %908 = vdwg.mxu0
          %v909 = vmul.f32 %v904, %v904
          %v910 = vmul.f32 %v907, %v907
          %911 = vadd.xlane.f32.xlu0 %v909
          %v912 = vpop.xlane.xlu0 %911
          %913 = vadd.xlane.f32.xlu0 %v910
          %v914 = vpop.xlane.xlu0 %913
          %v915 = vmax.f32 %v912, 1e-24
          %v916 = vmax.f32 %v914, 1e-24
          %v917 = vrsqrt.pop %v915
          %v918 = vmul.f32 %v917, %v915
          %v919 = vmul.f32 %v918, %v917
          %v920 = vmul.f32 0.5, %v919
          %v921 = vsub.f32 1.5, %v920
          %v922 = vmul.f32 %v917, %v921
          %vm923 = vweird.f32 %v915
          %vm924 = vweird.f32 %v917
          %vm925 = vmor %vm923, %vm924
          %v926 = vsel %vm925, %v917, %v922
          %v927 = vrsqrt.pop %v916
          %v928 = vmul.f32 %v927, %v916
          %v929 = vmul.f32 %v928, %v927
          %v930 = vmul.f32 0.5, %v929
          %v931 = vsub.f32 1.5, %v930
          %v932 = vmul.f32 %v927, %v931
          %vm933 = vweird.f32 %v916
          %vm934 = vweird.f32 %v927
          %vm935 = vmor %vm933, %vm934
          %v936 = vsel %vm935, %v927, %v932
          %v937 = vmul.f32 %v904, %v926
          %v938 = vmul.f32 %v907, %v936
          %s939 = scalar_lea.vmem [#allocation2], %s482
          %940 = vst [vmem:[%s939] sm:$0xff] %v937
          %941 = vst [vmem:[%s939 + $0x8] sm:$0xff] %v938
        $region80: #{tpu_custom_call.1} parent=55 // pred_fallthru
          _
        %p942 = scmp.ge.s32.totalorder %s31, 1
        // Predicated region
        $region81: #{tpu_custom_call.1} parent=55 // pred_check
          %p943 = pneg %p942
        $region82: #{tpu_custom_call.1} parent=55 // pred_check_branch
          %945 = sbr.rel (%p943) target = $region84
        $region83: #{tpu_custom_call.1} parent=55 // pred_region
          %v946 = vld [vmem:[%s422] sm:$0xff]
          %v947 = vld [vmem:[%s422 + $0x8] sm:$0xff]
          %v948 = vld [vmem:[%s422 + $0x10] sm:$0xff]
          %v949 = vld [vmem:[%s422 + $0x18] sm:$0xff]
          %v950 = vld [vmem:[%s422 + $0x20] sm:$0xff]
          %v951 = vld [vmem:[%s422 + $0x28] sm:$0xff]
          %v952 = vld [vmem:[%s422 + $0x30] sm:$0xff]
          %v953 = vld [vmem:[%s422 + $0x38] sm:$0xff]
          %v954 = vld [vmem:[%s422 + $0x40] sm:$0xff]
          %v955 = vld [vmem:[%s422 + $0x48] sm:$0xff]
          %v956 = vld [vmem:[%s422 + $0x50] sm:$0xff]
          %v957 = vld [vmem:[%s422 + $0x58] sm:$0xff]
          %v958 = vld [vmem:[%s422 + $0x60] sm:$0xff]
          %v959 = vld [vmem:[%s422 + $0x68] sm:$0xff]
          %v960 = vld [vmem:[%s422 + $0x70] sm:$0xff]
          %v961 = vld [vmem:[%s422 + $0x78] sm:$0xff]
          %v962 = vld [vmem:[#allocation8] sm:$0xff]
          %v963 = vld [vmem:[#allocation8 + $0x8] sm:$0xff]
          %v964 = vld [vmem:[#allocation8 + $0x10] sm:$0xff]
          %v965 = vld [vmem:[#allocation8 + $0x18] sm:$0xff]
          %v966 = vld [vmem:[#allocation8 + $0x20] sm:$0xff]
          %v967 = vld [vmem:[#allocation8 + $0x28] sm:$0xff]
          %v968 = vld [vmem:[#allocation8 + $0x30] sm:$0xff]
          %v969 = vld [vmem:[#allocation8 + $0x38] sm:$0xff]
          %v970 = vld [vmem:[#allocation8 + $0x40] sm:$0xff]
          %v971 = vld [vmem:[#allocation8 + $0x48] sm:$0xff]
          %v972 = vld [vmem:[#allocation8 + $0x50] sm:$0xff]
          %v973 = vld [vmem:[#allocation8 + $0x58] sm:$0xff]
          %v974 = vld [vmem:[#allocation8 + $0x60] sm:$0xff]
          %v975 = vld [vmem:[#allocation8 + $0x68] sm:$0xff]
          %v976 = vld [vmem:[#allocation8 + $0x70] sm:$0xff]
          %v977 = vld [vmem:[#allocation8 + $0x78] sm:$0xff]
          %v978 = vld [vmem:[#allocation8 + $0x80] sm:$0xff]
          %v979 = vld [vmem:[#allocation8 + $0x88] sm:$0xff]
          %v980 = vld [vmem:[#allocation8 + $0x90] sm:$0xff]
          %v981 = vld [vmem:[#allocation8 + $0x98] sm:$0xff]
          %v982 = vld [vmem:[#allocation8 + $0xa0] sm:$0xff]
          %v983 = vld [vmem:[#allocation8 + $0xa8] sm:$0xff]
          %v984 = vld [vmem:[#allocation8 + $0xb0] sm:$0xff]
          %v985 = vld [vmem:[#allocation8 + $0xb8] sm:$0xff]
          %v986 = vld [vmem:[#allocation8 + $0xc0] sm:$0xff]
          %v987 = vld [vmem:[#allocation8 + $0xc8] sm:$0xff]
          %v988 = vld [vmem:[#allocation8 + $0xd0] sm:$0xff]
          %v989 = vld [vmem:[#allocation8 + $0xd8] sm:$0xff]
          %v990 = vld [vmem:[#allocation8 + $0xe0] sm:$0xff]
          %v991 = vld [vmem:[#allocation8 + $0xe8] sm:$0xff]
          %v992 = vld [vmem:[#allocation8 + $0xf0] sm:$0xff]
          %v993 = vld [vmem:[#allocation8 + $0xf8] sm:$0xff]
          %v994 = vld [vmem:[#allocation8 + $0x100] sm:$0xff]
          %v995 = vld [vmem:[#allocation8 + $0x108] sm:$0xff]
          %v996 = vld [vmem:[#allocation8 + $0x110] sm:$0xff]
          %v997 = vld [vmem:[#allocation8 + $0x118] sm:$0xff]
          %v998 = vld [vmem:[#allocation8 + $0x120] sm:$0xff]
          %v999 = vld [vmem:[#allocation8 + $0x128] sm:$0xff]
          %v1000 = vld [vmem:[#allocation8 + $0x130] sm:$0xff]
          %v1001 = vld [vmem:[#allocation8 + $0x138] sm:$0xff]
          %v1002 = vld [vmem:[#allocation8 + $0x140] sm:$0xff]
          %v1003 = vld [vmem:[#allocation8 + $0x148] sm:$0xff]
          %v1004 = vld [vmem:[#allocation8 + $0x150] sm:$0xff]
          %v1005 = vld [vmem:[#allocation8 + $0x158] sm:$0xff]
          %v1006 = vld [vmem:[#allocation8 + $0x160] sm:$0xff]
          %v1007 = vld [vmem:[#allocation8 + $0x168] sm:$0xff]
          %v1008 = vld [vmem:[#allocation8 + $0x170] sm:$0xff]
          %v1009 = vld [vmem:[#allocation8 + $0x178] sm:$0xff]
          %v1010 = vld [vmem:[#allocation8 + $0x180] sm:$0xff]
          %v1011 = vld [vmem:[#allocation8 + $0x188] sm:$0xff]
          %v1012 = vld [vmem:[#allocation8 + $0x190] sm:$0xff]
          %v1013 = vld [vmem:[#allocation8 + $0x198] sm:$0xff]
          %v1014 = vld [vmem:[#allocation8 + $0x1a0] sm:$0xff]
          %v1015 = vld [vmem:[#allocation8 + $0x1a8] sm:$0xff]
          %v1016 = vld [vmem:[#allocation8 + $0x1b0] sm:$0xff]
          %v1017 = vld [vmem:[#allocation8 + $0x1b8] sm:$0xff]
          %v1018 = vld [vmem:[#allocation8 + $0x1c0] sm:$0xff]
          %v1019 = vld [vmem:[#allocation8 + $0x1c8] sm:$0xff]
          %v1020 = vld [vmem:[#allocation8 + $0x1d0] sm:$0xff]
          %v1021 = vld [vmem:[#allocation8 + $0x1d8] sm:$0xff]
          %v1022 = vld [vmem:[#allocation8 + $0x1e0] sm:$0xff]
          %v1023 = vld [vmem:[#allocation8 + $0x1e8] sm:$0xff]
          %v1024 = vld [vmem:[#allocation8 + $0x1f0] sm:$0xff]
          %v1025 = vld [vmem:[#allocation8 + $0x1f8] sm:$0xff]
          %v1026 = vld [vmem:[#allocation8 + $0x200] sm:$0xff]
          %v1027 = vld [vmem:[#allocation8 + $0x208] sm:$0xff]
          %v1028 = vld [vmem:[#allocation8 + $0x210] sm:$0xff]
          %v1029 = vld [vmem:[#allocation8 + $0x218] sm:$0xff]
          %v1030 = vld [vmem:[#allocation8 + $0x220] sm:$0xff]
          %v1031 = vld [vmem:[#allocation8 + $0x228] sm:$0xff]
          %v1032 = vld [vmem:[#allocation8 + $0x230] sm:$0xff]
          %v1033 = vld [vmem:[#allocation8 + $0x238] sm:$0xff]
          %v1034 = vld [vmem:[#allocation8 + $0x240] sm:$0xff]
          %v1035 = vld [vmem:[#allocation8 + $0x248] sm:$0xff]
          %v1036 = vld [vmem:[#allocation8 + $0x250] sm:$0xff]
          %v1037 = vld [vmem:[#allocation8 + $0x258] sm:$0xff]
          %v1038 = vld [vmem:[#allocation8 + $0x260] sm:$0xff]
          %v1039 = vld [vmem:[#allocation8 + $0x268] sm:$0xff]
          %v1040 = vld [vmem:[#allocation8 + $0x270] sm:$0xff]
          %v1041 = vld [vmem:[#allocation8 + $0x278] sm:$0xff]
          %v1042 = vld [vmem:[#allocation8 + $0x280] sm:$0xff]
          %v1043 = vld [vmem:[#allocation8 + $0x288] sm:$0xff]
          %v1044 = vld [vmem:[#allocation8 + $0x290] sm:$0xff]
          %v1045 = vld [vmem:[#allocation8 + $0x298] sm:$0xff]
          %v1046 = vld [vmem:[#allocation8 + $0x2a0] sm:$0xff]
          %v1047 = vld [vmem:[#allocation8 + $0x2a8] sm:$0xff]
          %v1048 = vld [vmem:[#allocation8 + $0x2b0] sm:$0xff]
          %v1049 = vld [vmem:[#allocation8 + $0x2b8] sm:$0xff]
          %v1050 = vld [vmem:[#allocation8 + $0x2c0] sm:$0xff]
          %v1051 = vld [vmem:[#allocation8 + $0x2c8] sm:$0xff]
          %v1052 = vld [vmem:[#allocation8 + $0x2d0] sm:$0xff]
          %v1053 = vld [vmem:[#allocation8 + $0x2d8] sm:$0xff]
          %v1054 = vld [vmem:[#allocation8 + $0x2e0] sm:$0xff]
          %v1055 = vld [vmem:[#allocation8 + $0x2e8] sm:$0xff]
          %v1056 = vld [vmem:[#allocation8 + $0x2f0] sm:$0xff]
          %v1057 = vld [vmem:[#allocation8 + $0x2f8] sm:$0xff]
          %v1058 = vld [vmem:[#allocation8 + $0x300] sm:$0xff]
          %v1059 = vld [vmem:[#allocation8 + $0x308] sm:$0xff]
          %v1060 = vld [vmem:[#allocation8 + $0x310] sm:$0xff]
          %v1061 = vld [vmem:[#allocation8 + $0x318] sm:$0xff]
          %v1062 = vld [vmem:[#allocation8 + $0x320] sm:$0xff]
          %v1063 = vld [vmem:[#allocation8 + $0x328] sm:$0xff]
          %v1064 = vld [vmem:[#allocation8 + $0x330] sm:$0xff]
          %v1065 = vld [vmem:[#allocation8 + $0x338] sm:$0xff]
          %v1066 = vld [vmem:[#allocation8 + $0x340] sm:$0xff]
          %v1067 = vld [vmem:[#allocation8 + $0x348] sm:$0xff]
          %v1068 = vld [vmem:[#allocation8 + $0x350] sm:$0xff]
          %v1069 = vld [vmem:[#allocation8 + $0x358] sm:$0xff]
          %v1070 = vld [vmem:[#allocation8 + $0x360] sm:$0xff]
          %v1071 = vld [vmem:[#allocation8 + $0x368] sm:$0xff]
          %v1072 = vld [vmem:[#allocation8 + $0x370] sm:$0xff]
          %v1073 = vld [vmem:[#allocation8 + $0x378] sm:$0xff]
          %v1074 = vld [vmem:[#allocation8 + $0x380] sm:$0xff]
          %v1075 = vld [vmem:[#allocation8 + $0x388] sm:$0xff]
          %v1076 = vld [vmem:[#allocation8 + $0x390] sm:$0xff]
          %v1077 = vld [vmem:[#allocation8 + $0x398] sm:$0xff]
          %v1078 = vld [vmem:[#allocation8 + $0x3a0] sm:$0xff]
          %v1079 = vld [vmem:[#allocation8 + $0x3a8] sm:$0xff]
          %v1080 = vld [vmem:[#allocation8 + $0x3b0] sm:$0xff]
          %v1081 = vld [vmem:[#allocation8 + $0x3b8] sm:$0xff]
          %v1082 = vld [vmem:[#allocation8 + $0x3c0] sm:$0xff]
          %v1083 = vld [vmem:[#allocation8 + $0x3c8] sm:$0xff]
          %v1084 = vld [vmem:[#allocation8 + $0x3d0] sm:$0xff]
          %v1085 = vld [vmem:[#allocation8 + $0x3d8] sm:$0xff]
          %v1086 = vld [vmem:[#allocation8 + $0x3e0] sm:$0xff]
          %v1087 = vld [vmem:[#allocation8 + $0x3e8] sm:$0xff]
          %v1088 = vld [vmem:[#allocation8 + $0x3f0] sm:$0xff]
          %v1089 = vld [vmem:[#allocation8 + $0x3f8] sm:$0xff]
          %v1090 = vld [vmem:[%s3] sm:$0x1]
          %v1091 = vld [vmem:[#allocation9] sm:$0xff]
          %v1092 = vld [vmem:[#allocation9 + $0x8] sm:$0xff]
          %v1093 = vld [vmem:[#allocation9 + $0x10] sm:$0xff]
          %v1094 = vld [vmem:[#allocation9 + $0x18] sm:$0xff]
          %v1095 = vld [vmem:[#allocation9 + $0x20] sm:$0xff]
          %v1096 = vld [vmem:[#allocation9 + $0x28] sm:$0xff]
          %v1097 = vld [vmem:[#allocation9 + $0x30] sm:$0xff]
          %v1098 = vld [vmem:[#allocation9 + $0x38] sm:$0xff]
          %v1099 = vld [vmem:[#allocation9 + $0x40] sm:$0xff]
          %v1100 = vld [vmem:[#allocation9 + $0x48] sm:$0xff]
          %v1101 = vld [vmem:[#allocation9 + $0x50] sm:$0xff]
          %v1102 = vld [vmem:[#allocation9 + $0x58] sm:$0xff]
          %v1103 = vld [vmem:[#allocation9 + $0x60] sm:$0xff]
          %v1104 = vld [vmem:[#allocation9 + $0x68] sm:$0xff]
          %v1105 = vld [vmem:[#allocation9 + $0x70] sm:$0xff]
          %v1106 = vld [vmem:[#allocation9 + $0x78] sm:$0xff]
          %v1107 = vld [vmem:[%s5] sm:$0x1]
          %v1108 = vld [vmem:[#allocation11] sm:$0xff]
          %v1109 = vld [vmem:[#allocation11 + $0x8] sm:$0xff]
          %v1110 = vld [vmem:[#allocation11 + $0x10] sm:$0xff]
          %v1111 = vld [vmem:[#allocation11 + $0x18] sm:$0xff]
          %v1112 = vld [vmem:[#allocation11 + $0x20] sm:$0xff]
          %v1113 = vld [vmem:[#allocation11 + $0x28] sm:$0xff]
          %v1114 = vld [vmem:[#allocation11 + $0x30] sm:$0xff]
          %v1115 = vld [vmem:[#allocation11 + $0x38] sm:$0xff]
          %v1116 = vld [vmem:[#allocation11 + $0x40] sm:$0xff]
          %v1117 = vld [vmem:[#allocation11 + $0x48] sm:$0xff]
          %v1118 = vld [vmem:[#allocation11 + $0x50] sm:$0xff]
          %v1119 = vld [vmem:[#allocation11 + $0x58] sm:$0xff]
          %v1120 = vld [vmem:[#allocation11 + $0x60] sm:$0xff]
          %v1121 = vld [vmem:[#allocation11 + $0x68] sm:$0xff]
          %v1122 = vld [vmem:[#allocation11 + $0x70] sm:$0xff]
          %v1123 = vld [vmem:[#allocation11 + $0x78] sm:$0xff]
          %v1124 = vld [vmem:[%s7] sm:$0x1]
          %v1126 = vperm.slane %v1090, 0
          %1128 = vmatpush.msra.mxu0 %v977
          %1129 = vmatpush.msra.mxu0 %v976
          %1130 = vmatpush.msra.mxu0 %v975
          %1131 = vmatpush.msra.mxu0 %v974
          %1132 = vmatpush.msra.mxu0 %v973
          %1133 = vmatpush.msra.mxu0 %v972
          %1134 = vmatpush.msra.mxu0 %v971
          %1135 = vmatpush.msra.mxu0 %v970
          %1136 = vmatpush.msra.mxu0 %v969
          %1137 = vmatpush.msra.mxu0 %v968
          %1138 = vmatpush.msra.mxu0 %v967
          %1139 = vmatpush.msra.mxu0 %v966
          %1140 = vmatpush.msra.mxu0 %v965
          %1141 = vmatpush.msra.mxu0 %v964
          %1142 = vmatpush.msra.mxu0 %v963
          %1143 = vmatpush.msra.mxu0 %v962
          %1144 = vmatmul.f32.gmra.mxu0 %v946
          %v1145 = vpop.f32.mrf.mxu0
          %v1146 = vadd.f32 %v1126, %v1145
          %1147 = vmatmul.f32.gmra.mxu0 %v954
          %v1148 = vpop.f32.mrf.mxu0
          %v1149 = vadd.f32 %v1126, %v1148
          %1150 = vdwg.mxu0
          %1151 = vmatpush.msra.mxu0 %v993
          %1152 = vmatpush.msra.mxu0 %v992
          %1153 = vmatpush.msra.mxu0 %v991
          %1154 = vmatpush.msra.mxu0 %v990
          %1155 = vmatpush.msra.mxu0 %v989
          %1156 = vmatpush.msra.mxu0 %v988
          %1157 = vmatpush.msra.mxu0 %v987
          %1158 = vmatpush.msra.mxu0 %v986
          %1159 = vmatpush.msra.mxu0 %v985
          %1160 = vmatpush.msra.mxu0 %v984
          %1161 = vmatpush.msra.mxu0 %v983
          %1162 = vmatpush.msra.mxu0 %v982
          %1163 = vmatpush.msra.mxu0 %v981
          %1164 = vmatpush.msra.mxu0 %v980
          %1165 = vmatpush.msra.mxu0 %v979
          %1166 = vmatpush.msra.mxu0 %v978
          %1167 = vmatmul.f32.gmra.mxu0 %v947
          %v1168 = vpop.f32.mrf.mxu0
          %v1169 = vadd.f32 %v1146, %v1168
          %1170 = vmatmul.f32.gmra.mxu0 %v955
          %v1171 = vpop.f32.mrf.mxu0
          %v1172 = vadd.f32 %v1149, %v1171
          %1173 = vdwg.mxu0
          %1174 = vmatpush.msra.mxu0 %v1009
          %1175 = vmatpush.msra.mxu0 %v1008
          %1176 = vmatpush.msra.mxu0 %v1007
          %1177 = vmatpush.msra.mxu0 %v1006
          %1178 = vmatpush.msra.mxu0 %v1005
          %1179 = vmatpush.msra.mxu0 %v1004
          %1180 = vmatpush.msra.mxu0 %v1003
          %1181 = vmatpush.msra.mxu0 %v1002
          %1182 = vmatpush.msra.mxu0 %v1001
          %1183 = vmatpush.msra.mxu0 %v1000
          %1184 = vmatpush.msra.mxu0 %v999
          %1185 = vmatpush.msra.mxu0 %v998
          %1186 = vmatpush.msra.mxu0 %v997
          %1187 = vmatpush.msra.mxu0 %v996
          %1188 = vmatpush.msra.mxu0 %v995
          %1189 = vmatpush.msra.mxu0 %v994
          %1190 = vmatmul.f32.gmra.mxu0 %v948
          %v1191 = vpop.f32.mrf.mxu0
          %v1192 = vadd.f32 %v1169, %v1191
          %1193 = vmatmul.f32.gmra.mxu0 %v956
          %v1194 = vpop.f32.mrf.mxu0
          %v1195 = vadd.f32 %v1172, %v1194
          %1196 = vdwg.mxu0
          %1197 = vmatpush.msra.mxu0 %v1025
          %1198 = vmatpush.msra.mxu0 %v1024
          %1199 = vmatpush.msra.mxu0 %v1023
          %1200 = vmatpush.msra.mxu0 %v1022
          %1201 = vmatpush.msra.mxu0 %v1021
          %1202 = vmatpush.msra.mxu0 %v1020
          %1203 = vmatpush.msra.mxu0 %v1019
          %1204 = vmatpush.msra.mxu0 %v1018
          %1205 = vmatpush.msra.mxu0 %v1017
          %1206 = vmatpush.msra.mxu0 %v1016
          %1207 = vmatpush.msra.mxu0 %v1015
          %1208 = vmatpush.msra.mxu0 %v1014
          %1209 = vmatpush.msra.mxu0 %v1013
          %1210 = vmatpush.msra.mxu0 %v1012
          %1211 = vmatpush.msra.mxu0 %v1011
          %1212 = vmatpush.msra.mxu0 %v1010
          %1213 = vmatmul.f32.gmra.mxu0 %v949
          %v1214 = vpop.f32.mrf.mxu0
          %v1215 = vadd.f32 %v1192, %v1214
          %1216 = vmatmul.f32.gmra.mxu0 %v957
          %v1217 = vpop.f32.mrf.mxu0
          %v1218 = vadd.f32 %v1195, %v1217
          %1219 = vdwg.mxu0
          %1220 = vmatpush.msra.mxu0 %v1041
          %1221 = vmatpush.msra.mxu0 %v1040
          %1222 = vmatpush.msra.mxu0 %v1039
          %1223 = vmatpush.msra.mxu0 %v1038
          %1224 = vmatpush.msra.mxu0 %v1037
          %1225 = vmatpush.msra.mxu0 %v1036
          %1226 = vmatpush.msra.mxu0 %v1035
          %1227 = vmatpush.msra.mxu0 %v1034
          %1228 = vmatpush.msra.mxu0 %v1033
          %1229 = vmatpush.msra.mxu0 %v1032
          %1230 = vmatpush.msra.mxu0 %v1031
          %1231 = vmatpush.msra.mxu0 %v1030
          %1232 = vmatpush.msra.mxu0 %v1029
          %1233 = vmatpush.msra.mxu0 %v1028
          %1234 = vmatpush.msra.mxu0 %v1027
          %1235 = vmatpush.msra.mxu0 %v1026
          %1236 = vmatmul.f32.gmra.mxu0 %v950
          %v1237 = vpop.f32.mrf.mxu0
          %v1238 = vadd.f32 %v1215, %v1237
          %1239 = vmatmul.f32.gmra.mxu0 %v958
          %v1240 = vpop.f32.mrf.mxu0
          %v1241 = vadd.f32 %v1218, %v1240
          %1242 = vdwg.mxu0
          %1243 = vmatpush.msra.mxu0 %v1057
          %1244 = vmatpush.msra.mxu0 %v1056
          %1245 = vmatpush.msra.mxu0 %v1055
          %1246 = vmatpush.msra.mxu0 %v1054
          %1247 = vmatpush.msra.mxu0 %v1053
          %1248 = vmatpush.msra.mxu0 %v1052
          %1249 = vmatpush.msra.mxu0 %v1051
          %1250 = vmatpush.msra.mxu0 %v1050
          %1251 = vmatpush.msra.mxu0 %v1049
          %1252 = vmatpush.msra.mxu0 %v1048
          %1253 = vmatpush.msra.mxu0 %v1047
          %1254 = vmatpush.msra.mxu0 %v1046
          %1255 = vmatpush.msra.mxu0 %v1045
          %1256 = vmatpush.msra.mxu0 %v1044
          %1257 = vmatpush.msra.mxu0 %v1043
          %1258 = vmatpush.msra.mxu0 %v1042
          %1259 = vmatmul.f32.gmra.mxu0 %v951
          %v1260 = vpop.f32.mrf.mxu0
          %v1261 = vadd.f32 %v1238, %v1260
          %1262 = vmatmul.f32.gmra.mxu0 %v959
          %v1263 = vpop.f32.mrf.mxu0
          %v1264 = vadd.f32 %v1241, %v1263
          %1265 = vdwg.mxu0
          %1266 = vmatpush.msra.mxu0 %v1073
          %1267 = vmatpush.msra.mxu0 %v1072
          %1268 = vmatpush.msra.mxu0 %v1071
          %1269 = vmatpush.msra.mxu0 %v1070
          %1270 = vmatpush.msra.mxu0 %v1069
          %1271 = vmatpush.msra.mxu0 %v1068
          %1272 = vmatpush.msra.mxu0 %v1067
          %1273 = vmatpush.msra.mxu0 %v1066
          %1274 = vmatpush.msra.mxu0 %v1065
          %1275 = vmatpush.msra.mxu0 %v1064
          %1276 = vmatpush.msra.mxu0 %v1063
          %1277 = vmatpush.msra.mxu0 %v1062
          %1278 = vmatpush.msra.mxu0 %v1061
          %1279 = vmatpush.msra.mxu0 %v1060
          %1280 = vmatpush.msra.mxu0 %v1059
          %1281 = vmatpush.msra.mxu0 %v1058
          %1282 = vmatmul.f32.gmra.mxu0 %v952
          %v1283 = vpop.f32.mrf.mxu0
          %v1284 = vadd.f32 %v1261, %v1283
          %1285 = vmatmul.f32.gmra.mxu0 %v960
          %v1286 = vpop.f32.mrf.mxu0
          %v1287 = vadd.f32 %v1264, %v1286
          %1288 = vdwg.mxu0
          %1289 = vmatpush.msra.mxu0 %v1089
          %1290 = vmatpush.msra.mxu0 %v1088
          %1291 = vmatpush.msra.mxu0 %v1087
          %1292 = vmatpush.msra.mxu0 %v1086
          %1293 = vmatpush.msra.mxu0 %v1085
          %1294 = vmatpush.msra.mxu0 %v1084
          %1295 = vmatpush.msra.mxu0 %v1083
          %1296 = vmatpush.msra.mxu0 %v1082
          %1297 = vmatpush.msra.mxu0 %v1081
          %1298 = vmatpush.msra.mxu0 %v1080
          %1299 = vmatpush.msra.mxu0 %v1079
          %1300 = vmatpush.msra.mxu0 %v1078
          %1301 = vmatpush.msra.mxu0 %v1077
          %1302 = vmatpush.msra.mxu0 %v1076
          %1303 = vmatpush.msra.mxu0 %v1075
          %1304 = vmatpush.msra.mxu0 %v1074
          %1305 = vmatmul.f32.gmra.mxu0 %v953
          %v1306 = vpop.f32.mrf.mxu0
          %v1307 = vadd.f32 %v1284, %v1306
          %1308 = vmatmul.f32.gmra.mxu0 %v961
          %v1309 = vpop.f32.mrf.mxu0
          %v1310 = vadd.f32 %v1287, %v1309
          %1311 = vdwg.mxu0
          %v1312 = vmax.f32 %v1307, 0.0
          %v1313 = vmax.f32 %v1310, 0.0
          %v1315 = vperm.slane %v1107, 0
          %1317 = vmatpush.msra.mxu0 %v1106
          %1318 = vmatpush.msra.mxu0 %v1105
          %1319 = vmatpush.msra.mxu0 %v1104
          %1320 = vmatpush.msra.mxu0 %v1103
          %1321 = vmatpush.msra.mxu0 %v1102
          %1322 = vmatpush.msra.mxu0 %v1101
          %1323 = vmatpush.msra.mxu0 %v1100
          %1324 = vmatpush.msra.mxu0 %v1099
          %1325 = vmatpush.msra.mxu0 %v1098
          %1326 = vmatpush.msra.mxu0 %v1097
          %1327 = vmatpush.msra.mxu0 %v1096
          %1328 = vmatpush.msra.mxu0 %v1095
          %1329 = vmatpush.msra.mxu0 %v1094
          %1330 = vmatpush.msra.mxu0 %v1093
          %1331 = vmatpush.msra.mxu0 %v1092
          %1332 = vmatpush.msra.mxu0 %v1091
          %1333 = vmatmul.f32.gmra.mxu0 %v1312
          %v1334 = vpop.f32.mrf.mxu0
          %v1335 = vadd.f32 %v1315, %v1334
          %1336 = vmatmul.f32.gmra.mxu0 %v1313
          %v1337 = vpop.f32.mrf.mxu0
          %v1338 = vadd.f32 %v1315, %v1337
          %1339 = vdwg.mxu0
          %v1340 = vmax.f32 %v1335, 0.0
          %v1341 = vmax.f32 %v1338, 0.0
          %v1343 = vperm.slane %v1124, 0
          %1345 = vmatpush.msra.mxu0 %v1123
          %1346 = vmatpush.msra.mxu0 %v1122
          %1347 = vmatpush.msra.mxu0 %v1121
          %1348 = vmatpush.msra.mxu0 %v1120
          %1349 = vmatpush.msra.mxu0 %v1119
          %1350 = vmatpush.msra.mxu0 %v1118
          %1351 = vmatpush.msra.mxu0 %v1117
          %1352 = vmatpush.msra.mxu0 %v1116
          %1353 = vmatpush.msra.mxu0 %v1115
          %1354 = vmatpush.msra.mxu0 %v1114
          %1355 = vmatpush.msra.mxu0 %v1113
          %1356 = vmatpush.msra.mxu0 %v1112
          %1357 = vmatpush.msra.mxu0 %v1111
          %1358 = vmatpush.msra.mxu0 %v1110
          %1359 = vmatpush.msra.mxu0 %v1109
          %1360 = vmatpush.msra.mxu0 %v1108
          %1361 = vmatmul.f32.gmra.mxu0 %v1340
          %v1362 = vpop.f32.mrf.mxu0
          %v1363 = vadd.f32 %v1343, %v1362
          %1364 = vmatmul.f32.gmra.mxu0 %v1341
          %v1365 = vpop.f32.mrf.mxu0
          %v1366 = vadd.f32 %v1343, %v1365
          %1367 = vdwg.mxu0
          %v1368 = vmul.f32 %v1363, %v1363
          %v1369 = vmul.f32 %v1366, %v1366
          %1370 = vadd.xlane.f32.xlu0 %v1368
          %v1371 = vpop.xlane.xlu0 %1370
          %1372 = vadd.xlane.f32.xlu0 %v1369
          %v1373 = vpop.xlane.xlu0 %1372
          %v1374 = vmax.f32 %v1371, 1e-24
          %v1375 = vmax.f32 %v1373, 1e-24
          %v1376 = vrsqrt.pop %v1374
          %v1377 = vmul.f32 %v1376, %v1374
          %v1378 = vmul.f32 %v1377, %v1376
          %v1379 = vmul.f32 0.5, %v1378
          %v1380 = vsub.f32 1.5, %v1379
          %v1381 = vmul.f32 %v1376, %v1380
          %vm1382 = vweird.f32 %v1374
          %vm1383 = vweird.f32 %v1376
          %vm1384 = vmor %vm1382, %vm1383
          %v1385 = vsel %vm1384, %v1376, %v1381
          %v1386 = vrsqrt.pop %v1375
          %v1387 = vmul.f32 %v1386, %v1375
          %v1388 = vmul.f32 %v1387, %v1386
          %v1389 = vmul.f32 0.5, %v1388
          %v1390 = vsub.f32 1.5, %v1389
          %v1391 = vmul.f32 %v1386, %v1390
          %vm1392 = vweird.f32 %v1375
          %vm1393 = vweird.f32 %v1386
          %vm1394 = vmor %vm1392, %vm1393
          %v1395 = vsel %vm1394, %v1386, %v1391
          %v1396 = vmul.f32 %v1363, %v1385
          %v1397 = vmul.f32 %v1366, %v1395
          %s1398 = scalar_lea.vmem [#allocation2], %s482
          %1399 = vst [vmem:[%s1398] sm:$0xff] %v1396
          %1400 = vst [vmem:[%s1398 + $0x8] sm:$0xff] %v1397
        $region84: #{tpu_custom_call.1} parent=55 // pred_fallthru
          _
        %p1401 = scmp.eq.s32.totalorder %s31, 1
        // Predicated region
        $region85: #{tpu_custom_call.1} parent=55 // pred_check
          %p1402 = pneg %p1401
        $region86: #{tpu_custom_call.1} parent=55 // pred_check_branch
          %1404 = sbr.rel (%p1402) target = $region88
        $region87: #{tpu_custom_call.1} parent=55 // pred_region
          %v1405 = vld [vmem:[#allocation2] sm:$0xff]
          %v1406 = vld [vmem:[#allocation2 + $0x8] sm:$0xff]
          %v1407 = vld [vmem:[#allocation2 + $0x10] sm:$0xff]
          %v1408 = vld [vmem:[#allocation2 + $0x18] sm:$0xff]
          %v1409 = vld [vmem:[%s8] sm:$0x1]
          %v1410 = vlaneseq
          %v1411 = vshrl.u32 %v1410, 7
          %v1412 = vadd.s32 %v1411, 8
          %v1413 = vadd.s32 %v1411, 16
          %v1414 = vadd.s32 %v1411, 24
          %v1415 = vadd.s32 %v1411, 32
          %v1416 = vadd.s32 %v1411, 40
          %v1417 = vadd.s32 %v1411, 48
          %v1418 = vadd.s32 %v1411, 56
          %v1419 = vadd.s32 %v1411, 64
          %v1420 = vadd.s32 %v1411, 72
          %v1421 = vadd.s32 %v1411, 80
          %v1422 = vadd.s32 %v1411, 88
          %v1423 = vadd.s32 %v1411, 96
          %v1424 = vadd.s32 %v1411, 104
          %v1425 = vadd.s32 %v1411, 112
          %v1426 = vadd.s32 %v1411, 120
          %v1427 = vperm.slane %v1409, 0
          %vm1428 = vcmp.eq.s32.totalorder %v1427, %v1411
          %vm1429 = vcmp.eq.s32.totalorder %v1427, %v1412
          %vm1430 = vcmp.eq.s32.totalorder %v1427, %v1413
          %vm1431 = vcmp.eq.s32.totalorder %v1427, %v1414
          %vm1432 = vcmp.eq.s32.totalorder %v1427, %v1415
          %vm1433 = vcmp.eq.s32.totalorder %v1427, %v1416
          %vm1434 = vcmp.eq.s32.totalorder %v1427, %v1417
          %vm1435 = vcmp.eq.s32.totalorder %v1427, %v1418
          %vm1436 = vcmp.eq.s32.totalorder %v1427, %v1419
          %vm1437 = vcmp.eq.s32.totalorder %v1427, %v1420
          %vm1438 = vcmp.eq.s32.totalorder %v1427, %v1421
          %vm1439 = vcmp.eq.s32.totalorder %v1427, %v1422
          %vm1440 = vcmp.eq.s32.totalorder %v1427, %v1423
          %vm1441 = vcmp.eq.s32.totalorder %v1427, %v1424
          %vm1442 = vcmp.eq.s32.totalorder %v1427, %v1425
          %vm1443 = vcmp.eq.s32.totalorder %v1427, %v1426
          %v1444 = vsel %vm1428, 1, 0
          %v1445 = vsel %vm1429, 1, 0
          %v1446 = vsel %vm1430, 1, 0
          %v1447 = vsel %vm1431, 1, 0
          %v1448 = vsel %vm1432, 1, 0
          %v1449 = vsel %vm1433, 1, 0
          %v1450 = vsel %vm1434, 1, 0
          %v1451 = vsel %vm1435, 1, 0
          %v1452 = vsel %vm1436, 1, 0
          %v1453 = vsel %vm1437, 1, 0
          %v1454 = vsel %vm1438, 1, 0
          %v1455 = vsel %vm1439, 1, 0
          %v1456 = vsel %vm1440, 1, 0
          %v1457 = vsel %vm1441, 1, 0
          %v1458 = vsel %vm1442, 1, 0
          %v1459 = vsel %vm1443, 1, 0
          %v1460 = vcvt.s32.f32 %v1444
          %v1461 = vcvt.s32.f32 %v1445
          %v1462 = vcvt.s32.f32 %v1446
          %v1463 = vcvt.s32.f32 %v1447
          %v1464 = vcvt.s32.f32 %v1448
          %v1465 = vcvt.s32.f32 %v1449
          %v1466 = vcvt.s32.f32 %v1450
          %v1467 = vcvt.s32.f32 %v1451
          %v1468 = vcvt.s32.f32 %v1452
          %v1469 = vcvt.s32.f32 %v1453
          %v1470 = vcvt.s32.f32 %v1454
          %v1471 = vcvt.s32.f32 %v1455
          %v1472 = vcvt.s32.f32 %v1456
          %v1473 = vcvt.s32.f32 %v1457
          %v1474 = vcvt.s32.f32 %v1458
          %v1475 = vcvt.s32.f32 %v1459
          %vm1476 = vcmask 130048
          %v1478 = vsel %vm1476, %v1460, 0
          %v1481 = vsel %vm1476, %v1461, 0
          %v1484 = vsel %vm1476, %v1462, 0
          %v1487 = vsel %vm1476, %v1463, 0
          %v1490 = vsel %vm1476, %v1464, 0
          %v1493 = vsel %vm1476, %v1465, 0
          %v1496 = vsel %vm1476, %v1466, 0
          %v1499 = vsel %vm1476, %v1467, 0
          %v1502 = vsel %vm1476, %v1468, 0
          %v1505 = vsel %vm1476, %v1469, 0
          %v1508 = vsel %vm1476, %v1470, 0
          %v1511 = vsel %vm1476, %v1471, 0
          %v1514 = vsel %vm1476, %v1472, 0
          %v1517 = vsel %vm1476, %v1473, 0
          %v1520 = vsel %vm1476, %v1474, 0
          %v1523 = vsel %vm1476, %v1475, 0
          %1525 = vmatpush.msra.mxu0 0.0
          %1526 = vmatpush.msra.mxu0 0.0
          %1527 = vmatpush.msra.mxu0 0.0
          %1528 = vmatpush.msra.mxu0 0.0
          %1529 = vmatpush.msra.mxu0 0.0
          %1530 = vmatpush.msra.mxu0 0.0
          %1531 = vmatpush.msra.mxu0 0.0
          %1532 = vmatpush.msra.mxu0 0.0
          %1533 = vmatpush.msra.mxu0 0.0
          %1534 = vmatpush.msra.mxu0 0.0
          %1535 = vmatpush.msra.mxu0 0.0
          %1536 = vmatpush.msra.mxu0 0.0
          %1537 = vmatpush.msra.mxu0 0.0
          %1538 = vmatpush.msra.mxu0 0.0
          %1539 = vmatpush.msra.mxu0 %v1406
          %1540 = vmatpush.msra.mxu0 %v1405
          %1541 = vmatmul.f32.gmra.mxu0 %v1478
          %v1542 = vpop.f32.mrf.mxu0
          %v1543 = vadd.f32 0.0, %v1542
          %1544 = vmatmul.f32.gmra.mxu0 %v1481
          %v1545 = vpop.f32.mrf.mxu0
          %v1546 = vadd.f32 0.0, %v1545
          %1547 = vmatmul.f32.gmra.mxu0 %v1484
          %v1548 = vpop.f32.mrf.mxu0
          %v1549 = vadd.f32 0.0, %v1548
          %1550 = vmatmul.f32.gmra.mxu0 %v1487
          %v1551 = vpop.f32.mrf.mxu0
          %v1552 = vadd.f32 0.0, %v1551
          %1553 = vmatmul.f32.gmra.mxu0 %v1490
          %v1554 = vpop.f32.mrf.mxu0
          %v1555 = vadd.f32 0.0, %v1554
          %1556 = vmatmul.f32.gmra.mxu0 %v1493
          %v1557 = vpop.f32.mrf.mxu0
          %v1558 = vadd.f32 0.0, %v1557
          %1559 = vmatmul.f32.gmra.mxu0 %v1496
          %v1560 = vpop.f32.mrf.mxu0
          %v1561 = vadd.f32 0.0, %v1560
          %1562 = vmatmul.f32.gmra.mxu0 %v1499
          %v1563 = vpop.f32.mrf.mxu0
          %v1564 = vadd.f32 0.0, %v1563
          %1565 = vmatmul.f32.gmra.mxu0 %v1502
          %v1566 = vpop.f32.mrf.mxu0
          %v1567 = vadd.f32 0.0, %v1566
          %1568 = vmatmul.f32.gmra.mxu0 %v1505
          %v1569 = vpop.f32.mrf.mxu0
          %v1570 = vadd.f32 0.0, %v1569
          %1571 = vmatmul.f32.gmra.mxu0 %v1508
          %v1572 = vpop.f32.mrf.mxu0
          %v1573 = vadd.f32 0.0, %v1572
          %1574 = vmatmul.f32.gmra.mxu0 %v1511
          %v1575 = vpop.f32.mrf.mxu0
          %v1576 = vadd.f32 0.0, %v1575
          %1577 = vmatmul.f32.gmra.mxu0 %v1514
          %v1578 = vpop.f32.mrf.mxu0
          %v1579 = vadd.f32 0.0, %v1578
          %1580 = vmatmul.f32.gmra.mxu0 %v1517
          %v1581 = vpop.f32.mrf.mxu0
          %v1582 = vadd.f32 0.0, %v1581
          %1583 = vmatmul.f32.gmra.mxu0 %v1520
          %v1584 = vpop.f32.mrf.mxu0
          %v1585 = vadd.f32 0.0, %v1584
          %1586 = vmatmul.f32.gmra.mxu0 %v1523
          %v1587 = vpop.f32.mrf.mxu0
          %v1588 = vadd.f32 0.0, %v1587
          %1589 = vdwg.mxu0
          %v1590 = vsel %vm1476, %v1460, 0.0
          %1591 = vadd.xlane.f32.xlu0 %v1590
          %v1592 = vpop.xlane.xlu0 %1591
          %v1593 = vsel %vm1476, %v1461, 0.0
          %1594 = vadd.xlane.f32.xlu0 %v1593
          %v1595 = vpop.xlane.xlu0 %1594
          %v1596 = vsel %vm1476, %v1462, 0.0
          %1597 = vadd.xlane.f32.xlu0 %v1596
          %v1598 = vpop.xlane.xlu0 %1597
          %v1599 = vsel %vm1476, %v1463, 0.0
          %1600 = vadd.xlane.f32.xlu0 %v1599
          %v1601 = vpop.xlane.xlu0 %1600
          %v1602 = vsel %vm1476, %v1464, 0.0
          %1603 = vadd.xlane.f32.xlu0 %v1602
          %v1604 = vpop.xlane.xlu0 %1603
          %v1605 = vsel %vm1476, %v1465, 0.0
          %1606 = vadd.xlane.f32.xlu0 %v1605
          %v1607 = vpop.xlane.xlu0 %1606
          %v1608 = vsel %vm1476, %v1466, 0.0
          %1609 = vadd.xlane.f32.xlu0 %v1608
          %v1610 = vpop.xlane.xlu0 %1609
          %v1611 = vsel %vm1476, %v1467, 0.0
          %1612 = vadd.xlane.f32.xlu0 %v1611
          %v1613 = vpop.xlane.xlu0 %1612
          %v1614 = vsel %vm1476, %v1468, 0.0
          %1615 = vadd.xlane.f32.xlu0 %v1614
          %v1616 = vpop.xlane.xlu0 %1615
          %v1617 = vsel %vm1476, %v1469, 0.0
          %1618 = vadd.xlane.f32.xlu0 %v1617
          %v1619 = vpop.xlane.xlu0 %1618
          %v1620 = vsel %vm1476, %v1470, 0.0
          %1621 = vadd.xlane.f32.xlu0 %v1620
          %v1622 = vpop.xlane.xlu0 %1621
          %v1623 = vsel %vm1476, %v1471, 0.0
          %1624 = vadd.xlane.f32.xlu0 %v1623
          %v1625 = vpop.xlane.xlu0 %1624
          %v1626 = vsel %vm1476, %v1472, 0.0
          %1627 = vadd.xlane.f32.xlu0 %v1626
          %v1628 = vpop.xlane.xlu0 %1627
          %v1629 = vsel %vm1476, %v1473, 0.0
          %1630 = vadd.xlane.f32.xlu0 %v1629
          %v1631 = vpop.xlane.xlu0 %1630
          %v1632 = vsel %vm1476, %v1474, 0.0
          %1633 = vadd.xlane.f32.xlu0 %v1632
          %v1634 = vpop.xlane.xlu0 %1633
          %v1635 = vsel %vm1476, %v1475, 0.0
          %1636 = vadd.xlane.f32.xlu0 %v1635
          %v1637 = vpop.xlane.xlu0 %1636
          %v1638 = vmax.f32 %v1592, 1.0
          %v1639 = vmax.f32 %v1595, 1.0
          %v1640 = vmax.f32 %v1598, 1.0
          %v1641 = vmax.f32 %v1601, 1.0
          %v1642 = vmax.f32 %v1604, 1.0
          %v1643 = vmax.f32 %v1607, 1.0
          %v1644 = vmax.f32 %v1610, 1.0
          %v1645 = vmax.f32 %v1613, 1.0
          %v1646 = vmax.f32 %v1616, 1.0
          %v1647 = vmax.f32 %v1619, 1.0
          %v1648 = vmax.f32 %v1622, 1.0
          %v1649 = vmax.f32 %v1625, 1.0
          %v1650 = vmax.f32 %v1628, 1.0
          %v1651 = vmax.f32 %v1631, 1.0
          %v1652 = vmax.f32 %v1634, 1.0
          %v1653 = vmax.f32 %v1637, 1.0
          %v1654 = vrcp.pop %v1638
          %v1655 = vmul.f32 %v1638, %v1654
          %v1656 = vsub.f32 1.0, %v1655
          %v1657 = vmul.f32 %v1654, %v1656
          %v1658 = vadd.f32 %v1654, %v1657
          %vm1659 = vweird.f32 %v1638
          %vm1660 = vweird.f32 %v1654
          %vm1661 = vmor %vm1659, %vm1660
          %v1662 = vsel %vm1661, %v1654, %v1658
          %v1663 = vand.u32 2147483647, %v1638
          %vm1664 = vcmp.eq.f32.partialorder %v1663, 8.507059e+37
          %v1665 = vand.u32 %v1638, 2147483648
          %v1666 = vor.u32 1.1754944e-38, %v1665
          %v1667 = vsel %vm1664, %v1666, %v1662
          %v1668 = vmul.f32 %v1543, %v1667
          %v1669 = vrcp.pop %v1639
          %v1670 = vmul.f32 %v1639, %v1669
          %v1671 = vsub.f32 1.0, %v1670
          %v1672 = vmul.f32 %v1669, %v1671
          %v1673 = vadd.f32 %v1669, %v1672
          %vm1674 = vweird.f32 %v1639
          %vm1675 = vweird.f32 %v1669
          %vm1676 = vmor %vm1674, %vm1675
          %v1677 = vsel %vm1676, %v1669, %v1673
          %v1678 = vand.u32 2147483647, %v1639
          %vm1679 = vcmp.eq.f32.partialorder %v1678, 8.507059e+37
          %v1680 = vand.u32 %v1639, 2147483648
          %v1681 = vor.u32 1.1754944e-38, %v1680
          %v1682 = vsel %vm1679, %v1681, %v1677
          %v1683 = vmul.f32 %v1546, %v1682
          %v1684 = vrcp.pop %v1640
          %v1685 = vmul.f32 %v1640, %v1684
          %v1686 = vsub.f32 1.0, %v1685
          %v1687 = vmul.f32 %v1684, %v1686
          %v1688 = vadd.f32 %v1684, %v1687
          %vm1689 = vweird.f32 %v1640
          %vm1690 = vweird.f32 %v1684
          %vm1691 = vmor %vm1689, %vm1690
          %v1692 = vsel %vm1691, %v1684, %v1688
          %v1693 = vand.u32 2147483647, %v1640
          %vm1694 = vcmp.eq.f32.partialorder %v1693, 8.507059e+37
          %v1695 = vand.u32 %v1640, 2147483648
          %v1696 = vor.u32 1.1754944e-38, %v1695
          %v1697 = vsel %vm1694, %v1696, %v1692
          %v1698 = vmul.f32 %v1549, %v1697
          %v1699 = vrcp.pop %v1641
          %v1700 = vmul.f32 %v1641, %v1699
          %v1701 = vsub.f32 1.0, %v1700
          %v1702 = vmul.f32 %v1699, %v1701
          %v1703 = vadd.f32 %v1699, %v1702
          %vm1704 = vweird.f32 %v1641
          %vm1705 = vweird.f32 %v1699
          %vm1706 = vmor %vm1704, %vm1705
          %v1707 = vsel %vm1706, %v1699, %v1703
          %v1708 = vand.u32 2147483647, %v1641
          %vm1709 = vcmp.eq.f32.partialorder %v1708, 8.507059e+37
          %v1710 = vand.u32 %v1641, 2147483648
          %v1711 = vor.u32 1.1754944e-38, %v1710
          %v1712 = vsel %vm1709, %v1711, %v1707
          %v1713 = vmul.f32 %v1552, %v1712
          %v1714 = vrcp.pop %v1642
          %v1715 = vmul.f32 %v1642, %v1714
          %v1716 = vsub.f32 1.0, %v1715
          %v1717 = vmul.f32 %v1714, %v1716
          %v1718 = vadd.f32 %v1714, %v1717
          %vm1719 = vweird.f32 %v1642
          %vm1720 = vweird.f32 %v1714
          %vm1721 = vmor %vm1719, %vm1720
          %v1722 = vsel %vm1721, %v1714, %v1718
          %v1723 = vand.u32 2147483647, %v1642
          %vm1724 = vcmp.eq.f32.partialorder %v1723, 8.507059e+37
          %v1725 = vand.u32 %v1642, 2147483648
          %v1726 = vor.u32 1.1754944e-38, %v1725
          %v1727 = vsel %vm1724, %v1726, %v1722
          %v1728 = vmul.f32 %v1555, %v1727
          %v1729 = vrcp.pop %v1643
          %v1730 = vmul.f32 %v1643, %v1729
          %v1731 = vsub.f32 1.0, %v1730
          %v1732 = vmul.f32 %v1729, %v1731
          %v1733 = vadd.f32 %v1729, %v1732
          %vm1734 = vweird.f32 %v1643
          %vm1735 = vweird.f32 %v1729
          %vm1736 = vmor %vm1734, %vm1735
          %v1737 = vsel %vm1736, %v1729, %v1733
          %v1738 = vand.u32 2147483647, %v1643
          %vm1739 = vcmp.eq.f32.partialorder %v1738, 8.507059e+37
          %v1740 = vand.u32 %v1643, 2147483648
          %v1741 = vor.u32 1.1754944e-38, %v1740
          %v1742 = vsel %vm1739, %v1741, %v1737
          %v1743 = vmul.f32 %v1558, %v1742
          %v1744 = vrcp.pop %v1644
          %v1745 = vmul.f32 %v1644, %v1744
          %v1746 = vsub.f32 1.0, %v1745
          %v1747 = vmul.f32 %v1744, %v1746
          %v1748 = vadd.f32 %v1744, %v1747
          %vm1749 = vweird.f32 %v1644
          %vm1750 = vweird.f32 %v1744
          %vm1751 = vmor %vm1749, %vm1750
          %v1752 = vsel %vm1751, %v1744, %v1748
          %v1753 = vand.u32 2147483647, %v1644
          %vm1754 = vcmp.eq.f32.partialorder %v1753, 8.507059e+37
          %v1755 = vand.u32 %v1644, 2147483648
          %v1756 = vor.u32 1.1754944e-38, %v1755
          %v1757 = vsel %vm1754, %v1756, %v1752
          %v1758 = vmul.f32 %v1561, %v1757
          %v1759 = vrcp.pop %v1645
          %v1760 = vmul.f32 %v1645, %v1759
          %v1761 = vsub.f32 1.0, %v1760
          %v1762 = vmul.f32 %v1759, %v1761
          %v1763 = vadd.f32 %v1759, %v1762
          %vm1764 = vweird.f32 %v1645
          %vm1765 = vweird.f32 %v1759
          %vm1766 = vmor %vm1764, %vm1765
          %v1767 = vsel %vm1766, %v1759, %v1763
          %v1768 = vand.u32 2147483647, %v1645
          %vm1769 = vcmp.eq.f32.partialorder %v1768, 8.507059e+37
          %v1770 = vand.u32 %v1645, 2147483648
          %v1771 = vor.u32 1.1754944e-38, %v1770
          %v1772 = vsel %vm1769, %v1771, %v1767
          %v1773 = vmul.f32 %v1564, %v1772
          %v1774 = vrcp.pop %v1646
          %v1775 = vmul.f32 %v1646, %v1774
          %v1776 = vsub.f32 1.0, %v1775
          %v1777 = vmul.f32 %v1774, %v1776
          %v1778 = vadd.f32 %v1774, %v1777
          %vm1779 = vweird.f32 %v1646
          %vm1780 = vweird.f32 %v1774
          %vm1781 = vmor %vm1779, %vm1780
          %v1782 = vsel %vm1781, %v1774, %v1778
          %v1783 = vand.u32 2147483647, %v1646
          %vm1784 = vcmp.eq.f32.partialorder %v1783, 8.507059e+37
          %v1785 = vand.u32 %v1646, 2147483648
          %v1786 = vor.u32 1.1754944e-38, %v1785
          %v1787 = vsel %vm1784, %v1786, %v1782
          %v1788 = vmul.f32 %v1567, %v1787
          %v1789 = vrcp.pop %v1647
          %v1790 = vmul.f32 %v1647, %v1789
          %v1791 = vsub.f32 1.0, %v1790
          %v1792 = vmul.f32 %v1789, %v1791
          %v1793 = vadd.f32 %v1789, %v1792
          %vm1794 = vweird.f32 %v1647
          %vm1795 = vweird.f32 %v1789
          %vm1796 = vmor %vm1794, %vm1795
          %v1797 = vsel %vm1796, %v1789, %v1793
          %v1798 = vand.u32 2147483647, %v1647
          %vm1799 = vcmp.eq.f32.partialorder %v1798, 8.507059e+37
          %v1800 = vand.u32 %v1647, 2147483648
          %v1801 = vor.u32 1.1754944e-38, %v1800
          %v1802 = vsel %vm1799, %v1801, %v1797
          %v1803 = vmul.f32 %v1570, %v1802
          %v1804 = vrcp.pop %v1648
          %v1805 = vmul.f32 %v1648, %v1804
          %v1806 = vsub.f32 1.0, %v1805
          %v1807 = vmul.f32 %v1804, %v1806
          %v1808 = vadd.f32 %v1804, %v1807
          %vm1809 = vweird.f32 %v1648
          %vm1810 = vweird.f32 %v1804
          %vm1811 = vmor %vm1809, %vm1810
          %v1812 = vsel %vm1811, %v1804, %v1808
          %v1813 = vand.u32 2147483647, %v1648
          %vm1814 = vcmp.eq.f32.partialorder %v1813, 8.507059e+37
          %v1815 = vand.u32 %v1648, 2147483648
          %v1816 = vor.u32 1.1754944e-38, %v1815
          %v1817 = vsel %vm1814, %v1816, %v1812
          %v1818 = vmul.f32 %v1573, %v1817
          %v1819 = vrcp.pop %v1649
          %v1820 = vmul.f32 %v1649, %v1819
          %v1821 = vsub.f32 1.0, %v1820
          %v1822 = vmul.f32 %v1819, %v1821
          %v1823 = vadd.f32 %v1819, %v1822
          %vm1824 = vweird.f32 %v1649
          %vm1825 = vweird.f32 %v1819
          %vm1826 = vmor %vm1824, %vm1825
          %v1827 = vsel %vm1826, %v1819, %v1823
          %v1828 = vand.u32 2147483647, %v1649
          %vm1829 = vcmp.eq.f32.partialorder %v1828, 8.507059e+37
          %v1830 = vand.u32 %v1649, 2147483648
          %v1831 = vor.u32 1.1754944e-38, %v1830
          %v1832 = vsel %vm1829, %v1831, %v1827
          %v1833 = vmul.f32 %v1576, %v1832
          %v1834 = vrcp.pop %v1650
          %v1835 = vmul.f32 %v1650, %v1834
          %v1836 = vsub.f32 1.0, %v1835
          %v1837 = vmul.f32 %v1834, %v1836
          %v1838 = vadd.f32 %v1834, %v1837
          %vm1839 = vweird.f32 %v1650
          %vm1840 = vweird.f32 %v1834
          %vm1841 = vmor %vm1839, %vm1840
          %v1842 = vsel %vm1841, %v1834, %v1838
          %v1843 = vand.u32 2147483647, %v1650
          %vm1844 = vcmp.eq.f32.partialorder %v1843, 8.507059e+37
          %v1845 = vand.u32 %v1650, 2147483648
          %v1846 = vor.u32 1.1754944e-38, %v1845
          %v1847 = vsel %vm1844, %v1846, %v1842
          %v1848 = vmul.f32 %v1579, %v1847
          %v1849 = vrcp.pop %v1651
          %v1850 = vmul.f32 %v1651, %v1849
          %v1851 = vsub.f32 1.0, %v1850
          %v1852 = vmul.f32 %v1849, %v1851
          %v1853 = vadd.f32 %v1849, %v1852
          %vm1854 = vweird.f32 %v1651
          %vm1855 = vweird.f32 %v1849
          %vm1856 = vmor %vm1854, %vm1855
          %v1857 = vsel %vm1856, %v1849, %v1853
          %v1858 = vand.u32 2147483647, %v1651
          %vm1859 = vcmp.eq.f32.partialorder %v1858, 8.507059e+37
          %v1860 = vand.u32 %v1651, 2147483648
          %v1861 = vor.u32 1.1754944e-38, %v1860
          %v1862 = vsel %vm1859, %v1861, %v1857
          %v1863 = vmul.f32 %v1582, %v1862
          %v1864 = vrcp.pop %v1652
          %v1865 = vmul.f32 %v1652, %v1864
          %v1866 = vsub.f32 1.0, %v1865
          %v1867 = vmul.f32 %v1864, %v1866
          %v1868 = vadd.f32 %v1864, %v1867
          %vm1869 = vweird.f32 %v1652
          %vm1870 = vweird.f32 %v1864
          %vm1871 = vmor %vm1869, %vm1870
          %v1872 = vsel %vm1871, %v1864, %v1868
          %v1873 = vand.u32 2147483647, %v1652
          %vm1874 = vcmp.eq.f32.partialorder %v1873, 8.507059e+37
          %v1875 = vand.u32 %v1652, 2147483648
          %v1876 = vor.u32 1.1754944e-38, %v1875
          %v1877 = vsel %vm1874, %v1876, %v1872
          %v1878 = vmul.f32 %v1585, %v1877
          %v1879 = vrcp.pop %v1653
          %v1880 = vmul.f32 %v1653, %v1879
          %v1881 = vsub.f32 1.0, %v1880
          %v1882 = vmul.f32 %v1879, %v1881
          %v1883 = vadd.f32 %v1879, %v1882
          %vm1884 = vweird.f32 %v1653
          %vm1885 = vweird.f32 %v1879
          %vm1886 = vmor %vm1884, %vm1885
          %v1887 = vsel %vm1886, %v1879, %v1883
          %v1888 = vand.u32 2147483647, %v1653
          %vm1889 = vcmp.eq.f32.partialorder %v1888, 8.507059e+37
          %v1890 = vand.u32 %v1653, 2147483648
          %v1891 = vor.u32 1.1754944e-38, %v1890
          %v1892 = vsel %vm1889, %v1891, %v1887
          %v1893 = vmul.f32 %v1588, %v1892
          %1894 = vst [vmem:[#allocation13] sm:$0xff] %v1668
          %1895 = vst [vmem:[#allocation13 + $0x8] sm:$0xff] %v1683
          %1896 = vst [vmem:[#allocation13 + $0x10] sm:$0xff] %v1698
          %1897 = vst [vmem:[#allocation13 + $0x18] sm:$0xff] %v1713
          %1898 = vst [vmem:[#allocation13 + $0x20] sm:$0xff] %v1728
          %1899 = vst [vmem:[#allocation13 + $0x28] sm:$0xff] %v1743
          %1900 = vst [vmem:[#allocation13 + $0x30] sm:$0xff] %v1758
          %1901 = vst [vmem:[#allocation13 + $0x38] sm:$0xff] %v1773
          %1902 = vst [vmem:[#allocation13 + $0x40] sm:$0xff] %v1788
          %1903 = vst [vmem:[#allocation13 + $0x48] sm:$0xff] %v1803
          %1904 = vst [vmem:[#allocation13 + $0x50] sm:$0xff] %v1818
          %1905 = vst [vmem:[#allocation13 + $0x58] sm:$0xff] %v1833
          %1906 = vst [vmem:[#allocation13 + $0x60] sm:$0xff] %v1848
          %1907 = vst [vmem:[#allocation13 + $0x68] sm:$0xff] %v1863
          %1908 = vst [vmem:[#allocation13 + $0x70] sm:$0xff] %v1878
          %1909 = vst [vmem:[#allocation13 + $0x78] sm:$0xff] %v1893
          %v1910 = vmul.f32 %v1668, %v1668
          %v1911 = vmul.f32 %v1683, %v1683
          %v1912 = vmul.f32 %v1698, %v1698
          %v1913 = vmul.f32 %v1713, %v1713
          %v1914 = vmul.f32 %v1728, %v1728
          %v1915 = vmul.f32 %v1743, %v1743
          %v1916 = vmul.f32 %v1758, %v1758
          %v1917 = vmul.f32 %v1773, %v1773
          %v1918 = vmul.f32 %v1788, %v1788
          %v1919 = vmul.f32 %v1803, %v1803
          %v1920 = vmul.f32 %v1818, %v1818
          %v1921 = vmul.f32 %v1833, %v1833
          %v1922 = vmul.f32 %v1848, %v1848
          %v1923 = vmul.f32 %v1863, %v1863
          %v1924 = vmul.f32 %v1878, %v1878
          %v1925 = vmul.f32 %v1893, %v1893
          %1926 = vmatpush.xpose.msra.mxu0 %v1893
          %1927 = vmatpush.xpose.msra.mxu0 %v1878
          %1928 = vmatpush.xpose.msra.mxu0 %v1863
          %1929 = vmatpush.xpose.msra.mxu0 %v1848
          %1930 = vmatpush.xpose.msra.mxu0 %v1833
          %1931 = vmatpush.xpose.msra.mxu0 %v1818
          %1932 = vmatpush.xpose.msra.mxu0 %v1803
          %1933 = vmatpush.xpose.msra.mxu0 %v1788
          %1934 = vmatpush.xpose.msra.mxu0 %v1773
          %1935 = vmatpush.xpose.msra.mxu0 %v1758
          %1936 = vmatpush.xpose.msra.mxu0 %v1743
          %1937 = vmatpush.xpose.msra.mxu0 %v1728
          %1938 = vmatpush.xpose.msra.mxu0 %v1713
          %1939 = vmatpush.xpose.msra.mxu0 %v1698
          %1940 = vmatpush.xpose.msra.mxu0 %v1683
          %1941 = vmatpush.xpose.msra.mxu0 %v1668
          %1942 = vmatmul.f32.gmra.mxu0 %v1407
          %v1943 = vpop.f32.mrf.mxu0
          %v1944 = vadd.f32 0.0, %v1943
          %1945 = vmatmul.f32.gmra.mxu0 %v1408
          %v1946 = vpop.f32.mrf.mxu0
          %v1947 = vadd.f32 0.0, %v1946
          %1948 = vdwg.mxu0
          %1949 = vmatpush.xpose.msra.mxu0 %v1925
          %1950 = vmatpush.xpose.msra.mxu0 %v1924
          %1951 = vmatpush.xpose.msra.mxu0 %v1923
          %1952 = vmatpush.xpose.msra.mxu0 %v1922
          %1953 = vmatpush.xpose.msra.mxu0 %v1921
          %1954 = vmatpush.xpose.msra.mxu0 %v1920
          %1955 = vmatpush.xpose.msra.mxu0 %v1919
          %1956 = vmatpush.xpose.msra.mxu0 %v1918
          %1957 = vmatpush.xpose.msra.mxu0 %v1917
          %1958 = vmatpush.xpose.msra.mxu0 %v1916
          %1959 = vmatpush.xpose.msra.mxu0 %v1915
          %1960 = vmatpush.xpose.msra.mxu0 %v1914
          %1961 = vmatpush.xpose.msra.mxu0 %v1913
          %1962 = vmatpush.xpose.msra.mxu0 %v1912
          %1963 = vmatpush.xpose.msra.mxu0 %v1911
          %1964 = vmatpush.xpose.msra.mxu0 %v1910
          %1965 = vmatmul.f32.gmra.mxu0 1.0
          %v1966 = vpop.f32.mrf.mxu0
          %v1967 = vadd.f32 1.0, %v1966
          %1968 = vdwg.mxu0
          %v1969 = vmul.f32 %v1944, 2.0
          %v1970 = vmul.f32 %v1947, 2.0
          %v1971 = vperm.slane %v1967, 0
          %v1972 = vsub.f32 %v1971, %v1969
          %v1973 = vsub.f32 %v1971, %v1970
          %v1974 = vmax.f32 %v1972, 0.0
          %v1975 = vmax.f32 %v1973, 0.0
          %v1976 = vrsqrt.pop %v1974
          %v1977 = vmul.f32 %v1976, %v1974
          %v1978 = vmul.f32 %v1977, %v1976
          %v1979 = vmul.f32 0.5, %v1978
          %v1980 = vsub.f32 1.5, %v1979
          %v1981 = vmul.f32 %v1976, %v1980
          %v1982 = vmul.f32 %v1974, %v1981
          %vm1983 = vcmp.eq.f32.partialorder %v1974, inf
          %v1984 = vsel %vm1983, %v1974, %v1982
          %vm1985 = vcmp.eq.f32.partialorder %v1974, 0.0
          %v1986 = vand.u32 %v1974, 2147483648
          %v1987 = vsel %vm1985, %v1986, %v1984
          %v1988 = vrsqrt.pop %v1975
          %v1989 = vmul.f32 %v1988, %v1975
          %v1990 = vmul.f32 %v1989, %v1988
          %v1991 = vmul.f32 0.5, %v1990
          %v1992 = vsub.f32 1.5, %v1991
          %v1993 = vmul.f32 %v1988, %v1992
          %v1994 = vmul.f32 %v1975, %v1993
          %vm1995 = vcmp.eq.f32.partialorder %v1975, inf
          %v1996 = vsel %vm1995, %v1975, %v1994
          %vm1997 = vcmp.eq.f32.partialorder %v1975, 0.0
          %v1998 = vand.u32 %v1975, 2147483648
          %v1999 = vsel %vm1997, %v1998, %v1996
          %v2000 = vsub.f32 0.0, %v1987
          %v2001 = vsub.f32 0.0, %v1999
          %2002 = vst [vmem:[#allocation12] sm:$0xff] %v2000
          %2003 = vst [vmem:[#allocation12 + $0x8] sm:$0xff] %v2001
        $region88: #{tpu_custom_call.1} parent=55 // pred_fallthru
          _
        // Predicated region
        $region89: #{tpu_custom_call.1} parent=55 // pred_check
          %p2004 = pneg %p253
        $region90: #{tpu_custom_call.1} parent=55 // pred_check_branch
          %2006 = sbr.rel (%p2004) target = $region92
        $region91: #{tpu_custom_call.1} parent=55 // pred_region
          %2008 = vsyncadd [#allocation5], 0
          %s2009 = sshll.u32 [#allocation12], 4
          %s2010 = int_to_ptr.vmem [resolvable:$true] %s2009
          %s2011 = sshll.u32 %s9, 4
          %s2012 = int_to_ptr.hbm [resolvable:$true] %s2011
          %2017 = dma.vmem_to_hbm [thread:$0]  %s2010, 256, %s2012, [#allocation5], 128, 128, 8
        $region92: #{tpu_custom_call.1} parent=55 // pred_fallthru
          _
        // Predicated region
        $region93: #{tpu_custom_call.1} parent=55 // pred_check
          %p2018 = pneg %p274
        $region94: #{tpu_custom_call.1} parent=55 // pred_check_branch
          %2020 = sbr.rel (%p2018) target = $region96
        $region95: #{tpu_custom_call.1} parent=55 // pred_region
          %2022 = vsyncadd [#allocation14], 0
          %s2023 = sshll.u32 [#allocation13], 4
          %s2024 = int_to_ptr.vmem [resolvable:$true] %s2023
          %s2025 = sshll.u32 %s10, 4
          %s2026 = int_to_ptr.hbm [resolvable:$true] %s2025
          %2031 = dma.vmem_to_hbm [thread:$0]  %s2024, 2048, %s2026, [#allocation14], 128, 128, 8
        $region96: #{tpu_custom_call.1} parent=55 // pred_fallthru
          _
        // Predicated region
        $region97: #{tpu_custom_call.1} parent=55 // pred_check
          %p2032 = pneg %p253
        $region98: #{tpu_custom_call.1} parent=55 // pred_check_branch
          %2034 = sbr.rel (%p2032) target = $region100
        $region99: #{tpu_custom_call.1} parent=55 // pred_region
          %2036 = dma.done [#allocation5], 256
        $region100: #{tpu_custom_call.1} parent=55 // pred_fallthru
          _
        // Predicated region
        $region101: #{tpu_custom_call.1} parent=55 // pred_check
          %p2037 = pneg %p274
        $region102: #{tpu_custom_call.1} parent=55 // pred_check_branch
          %2039 = sbr.rel (%p2037) target = $region104
        $region103: #{tpu_custom_call.1} parent=55 // pred_region
          %2041 = dma.done [#allocation14], 2048
        $region104: #{tpu_custom_call.1} parent=55 // pred_fallthru
          _
      $region56: #{tpu_custom_call.1} parent=5 // pred_fallthru
        _
      %p2042 = scmp.le.s32.totalorder 2, %s26
      // Predicated region
      $region105: #{tpu_custom_call.1} parent=5 // pred_check
        %p2043 = pneg %p2042
      $region106: #{tpu_custom_call.1} parent=5 // pred_check_branch
        %2045 = sbr.rel (%p2043) target = $region108
      $region107: #{tpu_custom_call.1} parent=5 // pred_region
        %s2046 = ssub.s32 %s26, 2
      $region108: #{tpu_custom_call.1} parent=5 // pred_fallthru
        _
    $region6: #{tpu_custom_call.1} parent=1 // loop_footer
      %s30 = sadd.s32 1, %s26
    $region7: #{tpu_custom_call.1} parent=1 // loop_footer_branch
      %25 = sbr.rel target = $region3
    $region8: #{tpu_custom_call.1} parent=1 // loop_exit
      _
    %2047 = vsyncpa [#allocation4], 1
    %s2048 = scalar_lea.sflag [#allocation4], 1
    %2049 = vsyncpa %s2048, 1
    %2050 = vsyncpa [#allocation7], 1
    %s2051 = scalar_lea.sflag [#allocation7], 1
    %2052 = vsyncpa %s2051, 1
    %2053 = vsyncpa [#allocation10], 1
    %2054 = vsyncpa [#allocation5], 1
    %s2055 = scalar_lea.sflag [#allocation5], 1
    %2056 = vsyncpa %s2055, 1
    %2057 = vsyncpa [#allocation14], 1

</llo_original>
